<compile_context>
chip_gen: v6e
topology: v6e:2x2x1
jax: 0.10.0
libtpu: 0.0.40
codegen_flags: <defaults>
</compile_context>

<pallas_src>
import jax
import jax.numpy as jnp
from jax import lax
from jax.experimental import pallas as pl
from jax.experimental.pallas import tpu as pltpu


def _make_lstm_kernel(n_layer, T, B, D, H, D_out):
    """Builds a kernel: full LSTM stack + last-step linear readout (lane-dense output)."""

    def kernel(*args):
        x_ref = args[0]                              # (T, B, D) f32 time-major input
        layer_refs = args[1:1 + 3 * n_layer]         # per layer: w_ih (Din,4H) bf16, w_hh (H,4H) bf16, b (1,4H) f32
        w_out_ref = args[1 + 3 * n_layer]            # (H, D_out) bf16 (zero-padded to 128 lanes)
        b_out_ref = args[2 + 3 * n_layer]            # (1, D_out) f32
        pred_ref = args[3 + 3 * n_layer]             # (B, D_out) f32 output (lane-dense)
        seq_sc = args[4 + 3 * n_layer]               # (T, B, H)  bf16 scratch: layer's hidden sequence
        proj_sc = args[5 + 3 * n_layer]              # (T, B, 4H) f32  scratch: hoisted input projection + bias

        # Single-tanh gate activation: sigma(x) = 0.5*tanh(0.5*x) + 0.5 on i/f/o lanes,
        # tanh(x) on g lanes, done with ONE EUP push per step:
        #   act = tanh(gates * sc) * sc + off
        # sc  = 0.5 (i/f/o) / 1.0 (g)   (pre-scale and post-mul happen to coincide)
        # off = 0.5 (i/f/o) / 0.0 (g)
        # Hoisted at full (B, 4H) so per-step ops are plain vreg-wide VALU mul/add
        # (broadcasts are not CSE'd by JAX, so never build these inside the loop).
        lane = lax.broadcasted_iota(jnp.int32, (B, 4 * H), 1)
        is_g = (lane >= 2 * H) & (lane < 3 * H)
        sc = jnp.where(is_g, 1.0, 0.5).astype(jnp.float32)
        off = jnp.where(is_g, 0.0, 0.5).astype(jnp.float32)

        def activate(gates):
            act = jnp.tanh(gates * sc) * sc + off     # one EUP push for all four gates
            return (act[:, 0:H], act[:, H:2 * H],
                    act[:, 2 * H:3 * H], act[:, 3 * H:4 * H])   # i, f, g, o

        h_last = jnp.zeros((B, H), jnp.float32)
        for layer in range(n_layer):
            w_ih = layer_refs[3 * layer][...]        # (D_in, 4H) bf16
            w_hh = layer_refs[3 * layer + 1][...]    # (H, 4H)    bf16
            b = layer_refs[3 * layer + 2][...]       # (1, 4H)    f32

            # --- hoisted input projection: ONE batched matmul over all timesteps ---
            if layer == 0:
                x_all = x_ref[...].reshape(T * B, D).astype(jnp.bfloat16)
            else:
                x_all = seq_sc[...].reshape(T * B, H)          # already bf16
            proj_sc[...] = (jnp.dot(x_all, w_ih, preferred_element_type=jnp.float32)
                            + b).reshape(T, B, 4 * H)

            # --- peeled t = 0: h0 == c0 == 0, so gates = proj and c = i*g (no h@W_hh) ---
            i0, f0, g0, o0 = activate(proj_sc[0])
            c = i0 * g0
            h = o0 * jnp.tanh(c)
            if layer < n_layer - 1:
                seq_sc[0] = h.astype(jnp.bfloat16)

            # --- recurrence t = 1..T-1: only h @ W_hh remains on the serial chain ---
            def body(t, carry, layer=layer, w_hh=w_hh):
                h, c = carry
                gates = proj_sc[t] + jnp.dot(h.astype(jnp.bfloat16), w_hh,
                                             preferred_element_type=jnp.float32)  # (B, 4H)
                i_g, f_g, g_g, o_g = activate(gates)
                c_new = f_g * c + i_g * g_g
                h_new = o_g * jnp.tanh(c_new)
                if layer < n_layer - 1:              # only lower layers feed the next one
                    seq_sc[t] = h_new.astype(jnp.bfloat16)
                return (h_new, c_new)

            h_last, _ = lax.fori_loop(1, T, body, (h, c), unroll=True)

        # Readout on the last timestep's hidden state of the top layer.
        # w_out / b_out are zero-padded to D_out = 128 lanes -> lane-dense store.
        pred_ref[...] = (jnp.dot(h_last.astype(jnp.bfloat16), w_out_ref[...],
                                 preferred_element_type=jnp.float32)
                         + b_out_ref[...])

    return kernel


def init_params(key, n_dims, n_embd, n_layer):
    """Deterministic params mirroring nn.LSTM / nn.Linear shapes (uniform +-1/sqrt(H)).

    Matmul weights are stored transposed and in bfloat16 (MXU-native); biases stay f32.
    The readout weight/bias are zero-padded to 128 output lanes for lane-dense stores.
    """
    H = n_embd
    D = n_dims
    bound = 1.0 / (H ** 0.5)
    d_out_pad = max(128, ((D + 127) // 128) * 128)

    w_ih, w_hh, b = [], [], []
    for l in range(n_layer):
        d_in = D if l == 0 else H
        key, k1, k2, k3, k4 = jax.random.split(key, 5)
        W_ih = jax.random.uniform(k1, (4 * H, d_in), jnp.float32, -bound, bound)
        W_hh = jax.random.uniform(k2, (4 * H, H), jnp.float32, -bound, bound)
        b_ih = jax.random.uniform(k3, (4 * H,), jnp.float32, -bound, bound)
        b_hh = jax.random.uniform(k4, (4 * H,), jnp.float32, -bound, bound)
        w_ih.append(W_ih.T.astype(jnp.bfloat16))                # (d_in, 4H) bf16
        w_hh.append(W_hh.T.astype(jnp.bfloat16))                # (H, 4H)    bf16
        b.append((b_ih + b_hh).reshape(1, 4 * H))               # (1, 4H)    f32

    key, k1, k2 = jax.random.split(key, 3)
    W_out = jax.random.uniform(k1, (D, H), jnp.float32, -bound, bound)
    b_out = jax.random.uniform(k2, (D,), jnp.float32, -bound, bound)
    w_out_pad = jnp.zeros((H, d_out_pad), jnp.float32).at[:, :D].set(W_out.T)
    b_out_pad = jnp.zeros((1, d_out_pad), jnp.float32).at[0, :D].set(b_out)

    return {
        "n_dims": n_dims, "n_embd": n_embd, "n_layer": n_layer, "d_out_pad": d_out_pad,
        "w_ih": w_ih, "w_hh": w_hh, "b": b,
        "w_out": w_out_pad.astype(jnp.bfloat16),                # (H, 128) bf16
        "b_out": b_out_pad,                                     # (1, 128) f32
    }


def lstm_model_forward(params, data, o_vars=None):
    """Equivalent of LSTMModel.forward(data, o_vars) -> (pred, gt). o_vars is unused (as in PyTorch)."""
    del o_vars
    B, S, D = data.shape
    H = params["n_embd"]
    n_layer = params["n_layer"]
    d_out_pad = params["d_out_pad"]
    T = S - 1

    x_tm = jnp.transpose(data[:, :-1, :], (1, 0, 2)).astype(jnp.float32)  # (T, B, D) time-major
    gt = data[:, -1, :]

    # Pad batch rows to a multiple of 8 sublanes (full VPU/MXU row occupancy).
    # Padded rows are independent garbage sequences and are sliced off afterwards.
    B_pad = max(8, ((B + 7) // 8) * 8)
    if B_pad != B:
        x_tm = jnp.pad(x_tm, ((0, 0), (0, B_pad - B), (0, 0)))

    inputs = [x_tm]
    for l in range(n_layer):
        inputs += [params["w_ih"][l], params["w_hh"][l], params["b"][l]]
    inputs += [params["w_out"], params["b_out"]]

    pred = pl.pallas_call(
        _make_lstm_kernel(n_layer, T, B_pad, D, H, d_out_pad),
        out_shape=jax.ShapeDtypeStruct((B_pad, d_out_pad), jnp.float32),
        in_specs=[pl.BlockSpec(memory_space=pltpu.MemorySpace.VMEM)] * len(inputs),
        out_specs=pl.BlockSpec(memory_space=pltpu.MemorySpace.VMEM),
        scratch_shapes=[pltpu.VMEM((T, B_pad, H), jnp.bfloat16),       # hidden sequence (bf16)
                        pltpu.VMEM((T, B_pad, 4 * H), jnp.float32)],   # hoisted projection
    )(*inputs)
    return pred[:B, :D], gt


def lstm_model_ref(params, data):
    """Pure-JAX reference with matching bf16-matmul / f32-accumulation numerics."""
    B, S, D = data.shape
    H = params["n_embd"]
    h_seq = jnp.transpose(data[:, :-1, :], (1, 0, 2)).astype(jnp.float32)  # (T, B, D)
    h = jnp.zeros((B, H), jnp.float32)
    for l in range(params["n_layer"]):
        w_ih, w_hh, b = params["w_ih"][l], params["w_hh"][l], params["b"][l]

        def step(carry, x_t, w_ih=w_ih, w_hh=w_hh, b=b):
            h, c = carry
            gates = (jnp.dot(x_t.astype(jnp.bfloat16), w_ih, preferred_element_type=jnp.float32)
                     + jnp.dot(h.astype(jnp.bfloat16), w_hh, preferred_element_type=jnp.float32)
                     + b)
            i, f, g, o = jnp.split(gates, 4, axis=-1)
            c = jax.nn.sigmoid(f) * c + jax.nn.sigmoid(i) * jnp.tanh(g)
            h = jax.nn.sigmoid(o) * jnp.tanh(c)
            return (h, c), h

        (h, _), h_seq = lax.scan(step, (jnp.zeros((B, H), jnp.float32),
                                        jnp.zeros((B, H), jnp.float32)), h_seq)
    pred = (jnp.dot(h.astype(jnp.bfloat16), params["w_out"],
                    preferred_element_type=jnp.float32) + params["b_out"])[:, :D]
    return pred, data[:, -1, :]


if __name__ == "__main__":
    n_dims, n_embd, n_layer = 16, 32, 2
    batch, seq = 2, 8

    key = jax.random.PRNGKey(0)
    pkey, dkey = jax.random.split(key)
    params = init_params(pkey, n_dims, n_embd, n_layer)
    data = jax.random.normal(dkey, (batch, seq, n_dims), jnp.float32)

    pred, gt = lstm_model_forward(params, data)
    jax.block_until_ready((pred, gt))

    pred_ref, gt_ref = lstm_model_ref(params, data)
    assert pred.shape == (batch, n_dims) and gt.shape == (batch, n_dims)
    # Tolerance absorbs the tanh-based sigmoid vs lax.logistic difference plus bf16
    # rounding of the recurrent operand; structural bugs produce errors >> 1e-1.
    assert jnp.allclose(pred, pred_ref, atol=2e-3, rtol=2e-3), "Pallas LSTM mismatch vs JAX reference"
    assert jnp.allclose(gt, gt_ref), "gt slice mismatch"

    print("KERNEL_OK")
</pallas_src>

<mosaic_0001>
module attributes {stable_mosaic.version = 11 : i64} {
  func.func @kernel(%arg0: memref<7x8x16xf32, #tpu.memory_space<vmem>>, %arg1: memref<16x128xbf16, #tpu.memory_space<vmem>>, %arg2: memref<32x128xbf16, #tpu.memory_space<vmem>>, %arg3: memref<1x128xf32, #tpu.memory_space<vmem>>, %arg4: memref<32x128xbf16, #tpu.memory_space<vmem>>, %arg5: memref<32x128xbf16, #tpu.memory_space<vmem>>, %arg6: memref<1x128xf32, #tpu.memory_space<vmem>>, %arg7: memref<32x128xbf16, #tpu.memory_space<vmem>>, %arg8: memref<1x128xf32, #tpu.memory_space<vmem>>, %arg9: memref<8x128xf32, #tpu.memory_space<vmem>>, %arg10: memref<7x8x32xbf16, #tpu.memory_space<vmem>>, %arg11: memref<7x8x128xf32, #tpu.memory_space<vmem>>) attributes {dimension_semantics = [], scalar_prefetch = 0 : i64, scratch_operands = 2 : i64, tpu.core_type = #tpu.core_type<tc>} {
    %0 = tpu.iota {dimensions = array<i32: 1>} : vector<8x128xi32>
    %c64_i32 = arith.constant 64 : i32
    %1 = vector.broadcast %c64_i32 : i32 to vector<8x128xi32>
    %2 = arith.cmpi sge, %0, %1 : vector<8x128xi32>
    %c96_i32 = arith.constant 96 : i32
    %3 = vector.broadcast %c96_i32 : i32 to vector<8x128xi32>
    %4 = arith.cmpi slt, %0, %3 : vector<8x128xi32>
    %5 = arith.andi %2, %4 : vector<8x128xi1>
    %cst = arith.constant 1.000000e+00 : f32
    %cst_0 = arith.constant 5.000000e-01 : f32
    %6 = vector.broadcast %cst : f32 to vector<8x128xf32>
    %7 = vector.broadcast %cst_0 : f32 to vector<8x128xf32>
    %8 = arith.select %5, %6, %7 : vector<8x128xi1>, vector<8x128xf32>
    %cst_1 = arith.constant 0.000000e+00 : f32
    %cst_2 = arith.constant 5.000000e-01 : f32
    %9 = vector.broadcast %cst_1 : f32 to vector<8x128xf32>
    %10 = vector.broadcast %cst_2 : f32 to vector<8x128xf32>
    %11 = arith.select %5, %9, %10 : vector<8x128xi1>, vector<8x128xf32>
    %c0 = arith.constant 0 : index
    %c0_3 = arith.constant 0 : index
    %12 = vector.load %arg1[%c0, %c0_3] : memref<16x128xbf16, #tpu.memory_space<vmem>>, vector<16x128xbf16>
    %c0_4 = arith.constant 0 : index
    %c0_5 = arith.constant 0 : index
    %13 = vector.load %arg2[%c0_4, %c0_5] : memref<32x128xbf16, #tpu.memory_space<vmem>>, vector<32x128xbf16>
    %c0_6 = arith.constant 0 : index
    %c0_7 = arith.constant 0 : index
    %14 = vector.load %arg3[%c0_6, %c0_7] : memref<1x128xf32, #tpu.memory_space<vmem>>, vector<1x128xf32>
    %c0_8 = arith.constant 0 : index
    %c0_9 = arith.constant 0 : index
    %c0_10 = arith.constant 0 : index
    %15 = vector.load %arg0[%c0_8, %c0_9, %c0_10] : memref<7x8x16xf32, #tpu.memory_space<vmem>>, vector<7x8x16xf32>
    %16 = vector.shape_cast %15 : vector<7x8x16xf32> to vector<56x16xf32>
    %17 = arith.truncf %16 : vector<56x16xf32> to vector<56x16xbf16>
    %cst_11 = arith.constant dense<0.000000e+00> : vector<56x128xf32>
    %18 = tpu.matmul %17, %12, %cst_11 {dimension_numbers = #tpu.dot_dimension_numbers<[1], [0], [0], [1], [0, 0, 1, 1], [], []>} : vector<56x16xbf16>, vector<16x128xbf16>, vector<56x128xf32> -> vector<56x128xf32>
    %19 = vector.broadcast %14 : vector<1x128xf32> to vector<56x128xf32>
    %20 = arith.addf %18, %19 : vector<56x128xf32>
    %21 = vector.shape_cast %20 : vector<56x128xf32> to vector<7x8x128xf32>
    %c0_12 = arith.constant 0 : index
    %c0_13 = arith.constant 0 : index
    %c0_14 = arith.constant 0 : index
    %22 = vector.load %arg11[%c0_12, %c0_13, %c0_14] : memref<7x8x128xf32, #tpu.memory_space<vmem>>, vector<7x8x128xf32>
    tpu.vector_store %arg11[%c0_12, %c0_13, %c0_14], %21 {strides = array<i32>} : memref<7x8x128xf32, #tpu.memory_space<vmem>>, vector<7x8x128xf32>,
    %c0_15 = arith.constant 0 : index
    %c0_16 = arith.constant 0 : index
    %c0_17 = arith.constant 0 : index
    %23 = vector.load %arg11[%c0_15, %c0_16, %c0_17] : memref<7x8x128xf32, #tpu.memory_space<vmem>>, vector<1x8x128xf32>
    %24 = vector.shape_cast %23 : vector<1x8x128xf32> to vector<8x128xf32>
    %25 = arith.mulf %24, %8 : vector<8x128xf32>
    %26 = math.tanh %25 : vector<8x128xf32>
    %27 = arith.mulf %26, %8 : vector<8x128xf32>
    %28 = arith.addf %27, %11 : vector<8x128xf32>
    %29 = vector.extract_strided_slice %28 {offsets = [0, 0], sizes = [8, 32], strides = [1, 1]} : vector<8x128xf32> to vector<8x32xf32>
    %30 = vector.extract_strided_slice %28 {offsets = [0, 64], sizes = [8, 32], strides = [1, 1]} : vector<8x128xf32> to vector<8x32xf32>
    %31 = vector.extract_strided_slice %28 {offsets = [0, 96], sizes = [8, 32], strides = [1, 1]} : vector<8x128xf32> to vector<8x32xf32>
    %32 = arith.mulf %29, %30 : vector<8x32xf32>
    %33 = math.tanh %32 : vector<8x32xf32>
    %34 = arith.mulf %31, %33 : vector<8x32xf32>
    %35 = arith.truncf %34 : vector<8x32xf32> to vector<8x32xbf16>
    %c0_18 = arith.constant 0 : index
    %c0_19 = arith.constant 0 : index
    %c0_20 = arith.constant 0 : index
    %36 = vector.load %arg10[%c0_18, %c0_19, %c0_20] : memref<7x8x32xbf16, #tpu.memory_space<vmem>>, vector<1x8x32xbf16>
    %37 = vector.shape_cast %36 : vector<1x8x32xbf16> to vector<8x32xbf16>
    %38 = vector.shape_cast %35 : vector<8x32xbf16> to vector<1x8x32xbf16>
    tpu.vector_store %arg10[%c0_18, %c0_19, %c0_20], %38 {strides = array<i32>} : memref<7x8x32xbf16, #tpu.memory_space<vmem>>, vector<1x8x32xbf16>,
    %c1_i32 = arith.constant 1 : i32
    %39 = arith.index_cast %c1_i32 : i32 to index
    %c0_21 = arith.constant 0 : index
    %c0_22 = arith.constant 0 : index
    %40 = vector.load %arg11[%39, %c0_21, %c0_22] : memref<7x8x128xf32, #tpu.memory_space<vmem>>, vector<1x8x128xf32>
    %41 = vector.shape_cast %40 : vector<1x8x128xf32> to vector<8x128xf32>
    %42 = arith.truncf %34 : vector<8x32xf32> to vector<8x32xbf16>
    %cst_23 = arith.constant dense<0.000000e+00> : vector<8x128xf32>
    %43 = tpu.matmul %42, %13, %cst_23 {dimension_numbers = #tpu.dot_dimension_numbers<[1], [0], [0], [1], [0, 0, 1, 1], [], []>} : vector<8x32xbf16>, vector<32x128xbf16>, vector<8x128xf32> -> vector<8x128xf32>
    %44 = arith.addf %41, %43 : vector<8x128xf32>
    %45 = arith.mulf %44, %8 : vector<8x128xf32>
    %46 = math.tanh %45 : vector<8x128xf32>
    %47 = arith.mulf %46, %8 : vector<8x128xf32>
    %48 = arith.addf %47, %11 : vector<8x128xf32>
    %49 = vector.extract_strided_slice %48 {offsets = [0, 0], sizes = [8, 32], strides = [1, 1]} : vector<8x128xf32> to vector<8x32xf32>
    %50 = vector.extract_strided_slice %48 {offsets = [0, 32], sizes = [8, 32], strides = [1, 1]} : vector<8x128xf32> to vector<8x32xf32>
    %51 = vector.extract_strided_slice %48 {offsets = [0, 64], sizes = [8, 32], strides = [1, 1]} : vector<8x128xf32> to vector<8x32xf32>
    %52 = vector.extract_strided_slice %48 {offsets = [0, 96], sizes = [8, 32], strides = [1, 1]} : vector<8x128xf32> to vector<8x32xf32>
    %53 = arith.mulf %50, %32 : vector<8x32xf32>
    %54 = arith.mulf %49, %51 : vector<8x32xf32>
    %55 = arith.addf %53, %54 : vector<8x32xf32>
    %56 = math.tanh %55 : vector<8x32xf32>
    %57 = arith.mulf %52, %56 : vector<8x32xf32>
    %58 = arith.truncf %57 : vector<8x32xf32> to vector<8x32xbf16>
    %59 = arith.index_cast %c1_i32 : i32 to index
    %c0_24 = arith.constant 0 : index
    %c0_25 = arith.constant 0 : index
    %60 = vector.load %arg10[%59, %c0_24, %c0_25] : memref<7x8x32xbf16, #tpu.memory_space<vmem>>, vector<1x8x32xbf16>
    %61 = vector.shape_cast %60 : vector<1x8x32xbf16> to vector<8x32xbf16>
    %62 = vector.shape_cast %58 : vector<8x32xbf16> to vector<1x8x32xbf16>
    tpu.vector_store %arg10[%59, %c0_24, %c0_25], %62 {strides = array<i32>} : memref<7x8x32xbf16, #tpu.memory_space<vmem>>, vector<1x8x32xbf16>,
    %c2_i32 = arith.constant 2 : i32
    %63 = arith.index_cast %c2_i32 : i32 to index
    %c0_26 = arith.constant 0 : index
    %c0_27 = arith.constant 0 : index
    %64 = vector.load %arg11[%63, %c0_26, %c0_27] : memref<7x8x128xf32, #tpu.memory_space<vmem>>, vector<1x8x128xf32>
    %65 = vector.shape_cast %64 : vector<1x8x128xf32> to vector<8x128xf32>
    %66 = arith.truncf %57 : vector<8x32xf32> to vector<8x32xbf16>
    %cst_28 = arith.constant dense<0.000000e+00> : vector<8x128xf32>
    %67 = tpu.matmul %66, %13, %cst_28 {dimension_numbers = #tpu.dot_dimension_numbers<[1], [0], [0], [1], [0, 0, 1, 1], [], []>} : vector<8x32xbf16>, vector<32x128xbf16>, vector<8x128xf32> -> vector<8x128xf32>
    %68 = arith.addf %65, %67 : vector<8x128xf32>
    %69 = arith.mulf %68, %8 : vector<8x128xf32>
    %70 = math.tanh %69 : vector<8x128xf32>
    %71 = arith.mulf %70, %8 : vector<8x128xf32>
    %72 = arith.addf %71, %11 : vector<8x128xf32>
    %73 = vector.extract_strided_slice %72 {offsets = [0, 0], sizes = [8, 32], strides = [1, 1]} : vector<8x128xf32> to vector<8x32xf32>
    %74 = vector.extract_strided_slice %72 {offsets = [0, 32], sizes = [8, 32], strides = [1, 1]} : vector<8x128xf32> to vector<8x32xf32>
    %75 = vector.extract_strided_slice %72 {offsets = [0, 64], sizes = [8, 32], strides = [1, 1]} : vector<8x128xf32> to vector<8x32xf32>
    %76 = vector.extract_strided_slice %72 {offsets = [0, 96], sizes = [8, 32], strides = [1, 1]} : vector<8x128xf32> to vector<8x32xf32>
    %77 = arith.mulf %74, %55 : vector<8x32xf32>
    %78 = arith.mulf %73, %75 : vector<8x32xf32>
    %79 = arith.addf %77, %78 : vector<8x32xf32>
    %80 = math.tanh %79 : vector<8x32xf32>
    %81 = arith.mulf %76, %80 : vector<8x32xf32>
    %82 = arith.truncf %81 : vector<8x32xf32> to vector<8x32xbf16>
    %83 = arith.index_cast %c2_i32 : i32 to index
    %c0_29 = arith.constant 0 : index
    %c0_30 = arith.constant 0 : index
    %84 = vector.load %arg10[%83, %c0_29, %c0_30] : memref<7x8x32xbf16, #tpu.memory_space<vmem>>, vector<1x8x32xbf16>
    %85 = vector.shape_cast %84 : vector<1x8x32xbf16> to vector<8x32xbf16>
    %86 = vector.shape_cast %82 : vector<8x32xbf16> to vector<1x8x32xbf16>
    tpu.vector_store %arg10[%83, %c0_29, %c0_30], %86 {strides = array<i32>} : memref<7x8x32xbf16, #tpu.memory_space<vmem>>, vector<1x8x32xbf16>,
    %c3_i32 = arith.constant 3 : i32
    %87 = arith.index_cast %c3_i32 : i32 to index
    %c0_31 = arith.constant 0 : index
    %c0_32 = arith.constant 0 : index
    %88 = vector.load %arg11[%87, %c0_31, %c0_32] : memref<7x8x128xf32, #tpu.memory_space<vmem>>, vector<1x8x128xf32>
    %89 = vector.shape_cast %88 : vector<1x8x128xf32> to vector<8x128xf32>
    %90 = arith.truncf %81 : vector<8x32xf32> to vector<8x32xbf16>
    %cst_33 = arith.constant dense<0.000000e+00> : vector<8x128xf32>
    %91 = tpu.matmul %90, %13, %cst_33 {dimension_numbers = #tpu.dot_dimension_numbers<[1], [0], [0], [1], [0, 0, 1, 1], [], []>} : vector<8x32xbf16>, vector<32x128xbf16>, vector<8x128xf32> -> vector<8x128xf32>
    %92 = arith.addf %89, %91 : vector<8x128xf32>
    %93 = arith.mulf %92, %8 : vector<8x128xf32>
    %94 = math.tanh %93 : vector<8x128xf32>
    %95 = arith.mulf %94, %8 : vector<8x128xf32>
    %96 = arith.addf %95, %11 : vector<8x128xf32>
    %97 = vector.extract_strided_slice %96 {offsets = [0, 0], sizes = [8, 32], strides = [1, 1]} : vector<8x128xf32> to vector<8x32xf32>
    %98 = vector.extract_strided_slice %96 {offsets = [0, 32], sizes = [8, 32], strides = [1, 1]} : vector<8x128xf32> to vector<8x32xf32>
    %99 = vector.extract_strided_slice %96 {offsets = [0, 64], sizes = [8, 32], strides = [1, 1]} : vector<8x128xf32> to vector<8x32xf32>
    %100 = vector.extract_strided_slice %96 {offsets = [0, 96], sizes = [8, 32], strides = [1, 1]} : vector<8x128xf32> to vector<8x32xf32>
    %101 = arith.mulf %98, %79 : vector<8x32xf32>
    %102 = arith.mulf %97, %99 : vector<8x32xf32>
    %103 = arith.addf %101, %102 : vector<8x32xf32>
    %104 = math.tanh %103 : vector<8x32xf32>
    %105 = arith.mulf %100, %104 : vector<8x32xf32>
    %106 = arith.truncf %105 : vector<8x32xf32> to vector<8x32xbf16>
    %107 = arith.index_cast %c3_i32 : i32 to index
    %c0_34 = arith.constant 0 : index
    %c0_35 = arith.constant 0 : index
    %108 = vector.load %arg10[%107, %c0_34, %c0_35] : memref<7x8x32xbf16, #tpu.memory_space<vmem>>, vector<1x8x32xbf16>
    %109 = vector.shape_cast %108 : vector<1x8x32xbf16> to vector<8x32xbf16>
    %110 = vector.shape_cast %106 : vector<8x32xbf16> to vector<1x8x32xbf16>
    tpu.vector_store %arg10[%107, %c0_34, %c0_35], %110 {strides = array<i32>} : memref<7x8x32xbf16, #tpu.memory_space<vmem>>, vector<1x8x32xbf16>,
    %c4_i32 = arith.constant 4 : i32
    %111 = arith.index_cast %c4_i32 : i32 to index
    %c0_36 = arith.constant 0 : index
    %c0_37 = arith.constant 0 : index
    %112 = vector.load %arg11[%111, %c0_36, %c0_37] : memref<7x8x128xf32, #tpu.memory_space<vmem>>, vector<1x8x128xf32>
    %113 = vector.shape_cast %112 : vector<1x8x128xf32> to vector<8x128xf32>
    %114 = arith.truncf %105 : vector<8x32xf32> to vector<8x32xbf16>
    %cst_38 = arith.constant dense<0.000000e+00> : vector<8x128xf32>
    %115 = tpu.matmul %114, %13, %cst_38 {dimension_numbers = #tpu.dot_dimension_numbers<[1], [0], [0], [1], [0, 0, 1, 1], [], []>} : vector<8x32xbf16>, vector<32x128xbf16>, vector<8x128xf32> -> vector<8x128xf32>
    %116 = arith.addf %113, %115 : vector<8x128xf32>
    %117 = arith.mulf %116, %8 : vector<8x128xf32>
    %118 = math.tanh %117 : vector<8x128xf32>
    %119 = arith.mulf %118, %8 : vector<8x128xf32>
    %120 = arith.addf %119, %11 : vector<8x128xf32>
    %121 = vector.extract_strided_slice %120 {offsets = [0, 0], sizes = [8, 32], strides = [1, 1]} : vector<8x128xf32> to vector<8x32xf32>
    %122 = vector.extract_strided_slice %120 {offsets = [0, 32], sizes = [8, 32], strides = [1, 1]} : vector<8x128xf32> to vector<8x32xf32>
    %123 = vector.extract_strided_slice %120 {offsets = [0, 64], sizes = [8, 32], strides = [1, 1]} : vector<8x128xf32> to vector<8x32xf32>
    %124 = vector.extract_strided_slice %120 {offsets = [0, 96], sizes = [8, 32], strides = [1, 1]} : vector<8x128xf32> to vector<8x32xf32>
    %125 = arith.mulf %122, %103 : vector<8x32xf32>
    %126 = arith.mulf %121, %123 : vector<8x32xf32>
    %127 = arith.addf %125, %126 : vector<8x32xf32>
    %128 = math.tanh %127 : vector<8x32xf32>
    %129 = arith.mulf %124, %128 : vector<8x32xf32>
    %130 = arith.truncf %129 : vector<8x32xf32> to vector<8x32xbf16>
    %131 = arith.index_cast %c4_i32 : i32 to index
    %c0_39 = arith.constant 0 : index
    %c0_40 = arith.constant 0 : index
    %132 = vector.load %arg10[%131, %c0_39, %c0_40] : memref<7x8x32xbf16, #tpu.memory_space<vmem>>, vector<1x8x32xbf16>
    %133 = vector.shape_cast %132 : vector<1x8x32xbf16> to vector<8x32xbf16>
    %134 = vector.shape_cast %130 : vector<8x32xbf16> to vector<1x8x32xbf16>
    tpu.vector_store %arg10[%131, %c0_39, %c0_40], %134 {strides = array<i32>} : memref<7x8x32xbf16, #tpu.memory_space<vmem>>, vector<1x8x32xbf16>,
    %c5_i32 = arith.constant 5 : i32
    %135 = arith.index_cast %c5_i32 : i32 to index
    %c0_41 = arith.constant 0 : index
    %c0_42 = arith.constant 0 : index
    %136 = vector.load %arg11[%135, %c0_41, %c0_42] : memref<7x8x128xf32, #tpu.memory_space<vmem>>, vector<1x8x128xf32>
    %137 = vector.shape_cast %136 : vector<1x8x128xf32> to vector<8x128xf32>
    %138 = arith.truncf %129 : vector<8x32xf32> to vector<8x32xbf16>
    %cst_43 = arith.constant dense<0.000000e+00> : vector<8x128xf32>
    %139 = tpu.matmul %138, %13, %cst_43 {dimension_numbers = #tpu.dot_dimension_numbers<[1], [0], [0], [1], [0, 0, 1, 1], [], []>} : vector<8x32xbf16>, vector<32x128xbf16>, vector<8x128xf32> -> vector<8x128xf32>
    %140 = arith.addf %137, %139 : vector<8x128xf32>
    %141 = arith.mulf %140, %8 : vector<8x128xf32>
    %142 = math.tanh %141 : vector<8x128xf32>
    %143 = arith.mulf %142, %8 : vector<8x128xf32>
    %144 = arith.addf %143, %11 : vector<8x128xf32>
    %145 = vector.extract_strided_slice %144 {offsets = [0, 0], sizes = [8, 32], strides = [1, 1]} : vector<8x128xf32> to vector<8x32xf32>
    %146 = vector.extract_strided_slice %144 {offsets = [0, 32], sizes = [8, 32], strides = [1, 1]} : vector<8x128xf32> to vector<8x32xf32>
    %147 = vector.extract_strided_slice %144 {offsets = [0, 64], sizes = [8, 32], strides = [1, 1]} : vector<8x128xf32> to vector<8x32xf32>
    %148 = vector.extract_strided_slice %144 {offsets = [0, 96], sizes = [8, 32], strides = [1, 1]} : vector<8x128xf32> to vector<8x32xf32>
    %149 = arith.mulf %146, %127 : vector<8x32xf32>
    %150 = arith.mulf %145, %147 : vector<8x32xf32>
    %151 = arith.addf %149, %150 : vector<8x32xf32>
    %152 = math.tanh %151 : vector<8x32xf32>
    %153 = arith.mulf %148, %152 : vector<8x32xf32>
    %154 = arith.truncf %153 : vector<8x32xf32> to vector<8x32xbf16>
    %155 = arith.index_cast %c5_i32 : i32 to index
    %c0_44 = arith.constant 0 : index
    %c0_45 = arith.constant 0 : index
    %156 = vector.load %arg10[%155, %c0_44, %c0_45] : memref<7x8x32xbf16, #tpu.memory_space<vmem>>, vector<1x8x32xbf16>
    %157 = vector.shape_cast %156 : vector<1x8x32xbf16> to vector<8x32xbf16>
    %158 = vector.shape_cast %154 : vector<8x32xbf16> to vector<1x8x32xbf16>
    tpu.vector_store %arg10[%155, %c0_44, %c0_45], %158 {strides = array<i32>} : memref<7x8x32xbf16, #tpu.memory_space<vmem>>, vector<1x8x32xbf16>,
    %c6_i32 = arith.constant 6 : i32
    %159 = arith.index_cast %c6_i32 : i32 to index
    %c0_46 = arith.constant 0 : index
    %c0_47 = arith.constant 0 : index
    %160 = vector.load %arg11[%159, %c0_46, %c0_47] : memref<7x8x128xf32, #tpu.memory_space<vmem>>, vector<1x8x128xf32>
    %161 = vector.shape_cast %160 : vector<1x8x128xf32> to vector<8x128xf32>
    %162 = arith.truncf %153 : vector<8x32xf32> to vector<8x32xbf16>
    %cst_48 = arith.constant dense<0.000000e+00> : vector<8x128xf32>
    %163 = tpu.matmul %162, %13, %cst_48 {dimension_numbers = #tpu.dot_dimension_numbers<[1], [0], [0], [1], [0, 0, 1, 1], [], []>} : vector<8x32xbf16>, vector<32x128xbf16>, vector<8x128xf32> -> vector<8x128xf32>
    %164 = arith.addf %161, %163 : vector<8x128xf32>
    %165 = arith.mulf %164, %8 : vector<8x128xf32>
    %166 = math.tanh %165 : vector<8x128xf32>
    %167 = arith.mulf %166, %8 : vector<8x128xf32>
    %168 = arith.addf %167, %11 : vector<8x128xf32>
    %169 = vector.extract_strided_slice %168 {offsets = [0, 0], sizes = [8, 32], strides = [1, 1]} : vector<8x128xf32> to vector<8x32xf32>
    %170 = vector.extract_strided_slice %168 {offsets = [0, 32], sizes = [8, 32], strides = [1, 1]} : vector<8x128xf32> to vector<8x32xf32>
    %171 = vector.extract_strided_slice %168 {offsets = [0, 64], sizes = [8, 32], strides = [1, 1]} : vector<8x128xf32> to vector<8x32xf32>
    %172 = vector.extract_strided_slice %168 {offsets = [0, 96], sizes = [8, 32], strides = [1, 1]} : vector<8x128xf32> to vector<8x32xf32>
    %173 = arith.mulf %170, %151 : vector<8x32xf32>
    %174 = arith.mulf %169, %171 : vector<8x32xf32>
    %175 = arith.addf %173, %174 : vector<8x32xf32>
    %176 = math.tanh %175 : vector<8x32xf32>
    %177 = arith.mulf %172, %176 : vector<8x32xf32>
    %178 = arith.truncf %177 : vector<8x32xf32> to vector<8x32xbf16>
    %179 = arith.index_cast %c6_i32 : i32 to index
    %c0_49 = arith.constant 0 : index
    %c0_50 = arith.constant 0 : index
    %180 = vector.load %arg10[%179, %c0_49, %c0_50] : memref<7x8x32xbf16, #tpu.memory_space<vmem>>, vector<1x8x32xbf16>
    %181 = vector.shape_cast %180 : vector<1x8x32xbf16> to vector<8x32xbf16>
    %182 = vector.shape_cast %178 : vector<8x32xbf16> to vector<1x8x32xbf16>
    tpu.vector_store %arg10[%179, %c0_49, %c0_50], %182 {strides = array<i32>} : memref<7x8x32xbf16, #tpu.memory_space<vmem>>, vector<1x8x32xbf16>,
    %c6_i32_51 = arith.constant 6 : i32
    %c0_52 = arith.constant 0 : index
    %c0_53 = arith.constant 0 : index
    %183 = vector.load %arg4[%c0_52, %c0_53] : memref<32x128xbf16, #tpu.memory_space<vmem>>, vector<32x128xbf16>
    %c0_54 = arith.constant 0 : index
    %c0_55 = arith.constant 0 : index
    %184 = vector.load %arg5[%c0_54, %c0_55] : memref<32x128xbf16, #tpu.memory_space<vmem>>, vector<32x128xbf16>
    %c0_56 = arith.constant 0 : index
    %c0_57 = arith.constant 0 : index
    %185 = vector.load %arg6[%c0_56, %c0_57] : memref<1x128xf32, #tpu.memory_space<vmem>>, vector<1x128xf32>
    %c0_58 = arith.constant 0 : index
    %c0_59 = arith.constant 0 : index
    %c0_60 = arith.constant 0 : index
    %186 = vector.load %arg10[%c0_58, %c0_59, %c0_60] : memref<7x8x32xbf16, #tpu.memory_space<vmem>>, vector<7x8x32xbf16>
    %187 = vector.shape_cast %186 : vector<7x8x32xbf16> to vector<56x32xbf16>
    %cst_61 = arith.constant dense<0.000000e+00> : vector<56x128xf32>
    %188 = tpu.matmul %187, %183, %cst_61 {dimension_numbers = #tpu.dot_dimension_numbers<[1], [0], [0], [1], [0, 0, 1, 1], [], []>} : vector<56x32xbf16>, vector<32x128xbf16>, vector<56x128xf32> -> vector<56x128xf32>
    %189 = vector.broadcast %185 : vector<1x128xf32> to vector<56x128xf32>
    %190 = arith.addf %188, %189 : vector<56x128xf32>
    %191 = vector.shape_cast %190 : vector<56x128xf32> to vector<7x8x128xf32>
    %c0_62 = arith.constant 0 : index
    %c0_63 = arith.constant 0 : index
    %c0_64 = arith.constant 0 : index
    %192 = vector.load %arg11[%c0_62, %c0_63, %c0_64] : memref<7x8x128xf32, #tpu.memory_space<vmem>>, vector<7x8x128xf32>
    tpu.vector_store %arg11[%c0_62, %c0_63, %c0_64], %191 {strides = array<i32>} : memref<7x8x128xf32, #tpu.memory_space<vmem>>, vector<7x8x128xf32>,
    %c0_65 = arith.constant 0 : index
    %c0_66 = arith.constant 0 : index
    %c0_67 = arith.constant 0 : index
    %193 = vector.load %arg11[%c0_65, %c0_66, %c0_67] : memref<7x8x128xf32, #tpu.memory_space<vmem>>, vector<1x8x128xf32>
    %194 = vector.shape_cast %193 : vector<1x8x128xf32> to vector<8x128xf32>
    %195 = arith.mulf %194, %8 : vector<8x128xf32>
    %196 = math.tanh %195 : vector<8x128xf32>
    %197 = arith.mulf %196, %8 : vector<8x128xf32>
    %198 = arith.addf %197, %11 : vector<8x128xf32>
    %199 = vector.extract_strided_slice %198 {offsets = [0, 0], sizes = [8, 32], strides = [1, 1]} : vector<8x128xf32> to vector<8x32xf32>
    %200 = vector.extract_strided_slice %198 {offsets = [0, 64], sizes = [8, 32], strides = [1, 1]} : vector<8x128xf32> to vector<8x32xf32>
    %201 = vector.extract_strided_slice %198 {offsets = [0, 96], sizes = [8, 32], strides = [1, 1]} : vector<8x128xf32> to vector<8x32xf32>
    %202 = arith.mulf %199, %200 : vector<8x32xf32>
    %203 = math.tanh %202 : vector<8x32xf32>
    %204 = arith.mulf %201, %203 : vector<8x32xf32>
    %c1_i32_68 = arith.constant 1 : i32
    %205 = arith.index_cast %c1_i32_68 : i32 to index
    %c0_69 = arith.constant 0 : index
    %c0_70 = arith.constant 0 : index
    %206 = vector.load %arg11[%205, %c0_69, %c0_70] : memref<7x8x128xf32, #tpu.memory_space<vmem>>, vector<1x8x128xf32>
    %207 = vector.shape_cast %206 : vector<1x8x128xf32> to vector<8x128xf32>
    %208 = arith.truncf %204 : vector<8x32xf32> to vector<8x32xbf16>
    %cst_71 = arith.constant dense<0.000000e+00> : vector<8x128xf32>
    %209 = tpu.matmul %208, %184, %cst_71 {dimension_numbers = #tpu.dot_dimension_numbers<[1], [0], [0], [1], [0, 0, 1, 1], [], []>} : vector<8x32xbf16>, vector<32x128xbf16>, vector<8x128xf32> -> vector<8x128xf32>
    %210 = arith.addf %207, %209 : vector<8x128xf32>
    %211 = arith.mulf %210, %8 : vector<8x128xf32>
    %212 = math.tanh %211 : vector<8x128xf32>
    %213 = arith.mulf %212, %8 : vector<8x128xf32>
    %214 = arith.addf %213, %11 : vector<8x128xf32>
    %215 = vector.extract_strided_slice %214 {offsets = [0, 0], sizes = [8, 32], strides = [1, 1]} : vector<8x128xf32> to vector<8x32xf32>
    %216 = vector.extract_strided_slice %214 {offsets = [0, 32], sizes = [8, 32], strides = [1, 1]} : vector<8x128xf32> to vector<8x32xf32>
    %217 = vector.extract_strided_slice %214 {offsets = [0, 64], sizes = [8, 32], strides = [1, 1]} : vector<8x128xf32> to vector<8x32xf32>
    %218 = vector.extract_strided_slice %214 {offsets = [0, 96], sizes = [8, 32], strides = [1, 1]} : vector<8x128xf32> to vector<8x32xf32>
    %219 = arith.mulf %216, %202 : vector<8x32xf32>
    %220 = arith.mulf %215, %217 : vector<8x32xf32>
    %221 = arith.addf %219, %220 : vector<8x32xf32>
    %222 = math.tanh %221 : vector<8x32xf32>
    %223 = arith.mulf %218, %222 : vector<8x32xf32>
    %c2_i32_72 = arith.constant 2 : i32
    %224 = arith.index_cast %c2_i32_72 : i32 to index
    %c0_73 = arith.constant 0 : index
    %c0_74 = arith.constant 0 : index
    %225 = vector.load %arg11[%224, %c0_73, %c0_74] : memref<7x8x128xf32, #tpu.memory_space<vmem>>, vector<1x8x128xf32>
    %226 = vector.shape_cast %225 : vector<1x8x128xf32> to vector<8x128xf32>
    %227 = arith.truncf %223 : vector<8x32xf32> to vector<8x32xbf16>
    %cst_75 = arith.constant dense<0.000000e+00> : vector<8x128xf32>
    %228 = tpu.matmul %227, %184, %cst_75 {dimension_numbers = #tpu.dot_dimension_numbers<[1], [0], [0], [1], [0, 0, 1, 1], [], []>} : vector<8x32xbf16>, vector<32x128xbf16>, vector<8x128xf32> -> vector<8x128xf32>
    %229 = arith.addf %226, %228 : vector<8x128xf32>
    %230 = arith.mulf %229, %8 : vector<8x128xf32>
    %231 = math.tanh %230 : vector<8x128xf32>
    %232 = arith.mulf %231, %8 : vector<8x128xf32>
    %233 = arith.addf %232, %11 : vector<8x128xf32>
    %234 = vector.extract_strided_slice %233 {offsets = [0, 0], sizes = [8, 32], strides = [1, 1]} : vector<8x128xf32> to vector<8x32xf32>
    %235 = vector.extract_strided_slice %233 {offsets = [0, 32], sizes = [8, 32], strides = [1, 1]} : vector<8x128xf32> to vector<8x32xf32>
    %236 = vector.extract_strided_slice %233 {offsets = [0, 64], sizes = [8, 32], strides = [1, 1]} : vector<8x128xf32> to vector<8x32xf32>
    %237 = vector.extract_strided_slice %233 {offsets = [0, 96], sizes = [8, 32], strides = [1, 1]} : vector<8x128xf32> to vector<8x32xf32>
    %238 = arith.mulf %235, %221 : vector<8x32xf32>
    %239 = arith.mulf %234, %236 : vector<8x32xf32>
    %240 = arith.addf %238, %239 : vector<8x32xf32>
    %241 = math.tanh %240 : vector<8x32xf32>
    %242 = arith.mulf %237, %241 : vector<8x32xf32>
    %c3_i32_76 = arith.constant 3 : i32
    %243 = arith.index_cast %c3_i32_76 : i32 to index
    %c0_77 = arith.constant 0 : index
    %c0_78 = arith.constant 0 : index
    %244 = vector.load %arg11[%243, %c0_77, %c0_78] : memref<7x8x128xf32, #tpu.memory_space<vmem>>, vector<1x8x128xf32>
    %245 = vector.shape_cast %244 : vector<1x8x128xf32> to vector<8x128xf32>
    %246 = arith.truncf %242 : vector<8x32xf32> to vector<8x32xbf16>
    %cst_79 = arith.constant dense<0.000000e+00> : vector<8x128xf32>
    %247 = tpu.matmul %246, %184, %cst_79 {dimension_numbers = #tpu.dot_dimension_numbers<[1], [0], [0], [1], [0, 0, 1, 1], [], []>} : vector<8x32xbf16>, vector<32x128xbf16>, vector<8x128xf32> -> vector<8x128xf32>
    %248 = arith.addf %245, %247 : vector<8x128xf32>
    %249 = arith.mulf %248, %8 : vector<8x128xf32>
    %250 = math.tanh %249 : vector<8x128xf32>
    %251 = arith.mulf %250, %8 : vector<8x128xf32>
    %252 = arith.addf %251, %11 : vector<8x128xf32>
    %253 = vector.extract_strided_slice %252 {offsets = [0, 0], sizes = [8, 32], strides = [1, 1]} : vector<8x128xf32> to vector<8x32xf32>
    %254 = vector.extract_strided_slice %252 {offsets = [0, 32], sizes = [8, 32], strides = [1, 1]} : vector<8x128xf32> to vector<8x32xf32>
    %255 = vector.extract_strided_slice %252 {offsets = [0, 64], sizes = [8, 32], strides = [1, 1]} : vector<8x128xf32> to vector<8x32xf32>
    %256 = vector.extract_strided_slice %252 {offsets = [0, 96], sizes = [8, 32], strides = [1, 1]} : vector<8x128xf32> to vector<8x32xf32>
    %257 = arith.mulf %254, %240 : vector<8x32xf32>
    %258 = arith.mulf %253, %255 : vector<8x32xf32>
    %259 = arith.addf %257, %258 : vector<8x32xf32>
    %260 = math.tanh %259 : vector<8x32xf32>
    %261 = arith.mulf %256, %260 : vector<8x32xf32>
    %c4_i32_80 = arith.constant 4 : i32
    %262 = arith.index_cast %c4_i32_80 : i32 to index
    %c0_81 = arith.constant 0 : index
    %c0_82 = arith.constant 0 : index
    %263 = vector.load %arg11[%262, %c0_81, %c0_82] : memref<7x8x128xf32, #tpu.memory_space<vmem>>, vector<1x8x128xf32>
    %264 = vector.shape_cast %263 : vector<1x8x128xf32> to vector<8x128xf32>
    %265 = arith.truncf %261 : vector<8x32xf32> to vector<8x32xbf16>
    %cst_83 = arith.constant dense<0.000000e+00> : vector<8x128xf32>
    %266 = tpu.matmul %265, %184, %cst_83 {dimension_numbers = #tpu.dot_dimension_numbers<[1], [0], [0], [1], [0, 0, 1, 1], [], []>} : vector<8x32xbf16>, vector<32x128xbf16>, vector<8x128xf32> -> vector<8x128xf32>
    %267 = arith.addf %264, %266 : vector<8x128xf32>
    %268 = arith.mulf %267, %8 : vector<8x128xf32>
    %269 = math.tanh %268 : vector<8x128xf32>
    %270 = arith.mulf %269, %8 : vector<8x128xf32>
    %271 = arith.addf %270, %11 : vector<8x128xf32>
    %272 = vector.extract_strided_slice %271 {offsets = [0, 0], sizes = [8, 32], strides = [1, 1]} : vector<8x128xf32> to vector<8x32xf32>
    %273 = vector.extract_strided_slice %271 {offsets = [0, 32], sizes = [8, 32], strides = [1, 1]} : vector<8x128xf32> to vector<8x32xf32>
    %274 = vector.extract_strided_slice %271 {offsets = [0, 64], sizes = [8, 32], strides = [1, 1]} : vector<8x128xf32> to vector<8x32xf32>
    %275 = vector.extract_strided_slice %271 {offsets = [0, 96], sizes = [8, 32], strides = [1, 1]} : vector<8x128xf32> to vector<8x32xf32>
    %276 = arith.mulf %273, %259 : vector<8x32xf32>
    %277 = arith.mulf %272, %274 : vector<8x32xf32>
    %278 = arith.addf %276, %277 : vector<8x32xf32>
    %279 = math.tanh %278 : vector<8x32xf32>
    %280 = arith.mulf %275, %279 : vector<8x32xf32>
    %c5_i32_84 = arith.constant 5 : i32
    %281 = arith.index_cast %c5_i32_84 : i32 to index
    %c0_85 = arith.constant 0 : index
    %c0_86 = arith.constant 0 : index
    %282 = vector.load %arg11[%281, %c0_85, %c0_86] : memref<7x8x128xf32, #tpu.memory_space<vmem>>, vector<1x8x128xf32>
    %283 = vector.shape_cast %282 : vector<1x8x128xf32> to vector<8x128xf32>
    %284 = arith.truncf %280 : vector<8x32xf32> to vector<8x32xbf16>
    %cst_87 = arith.constant dense<0.000000e+00> : vector<8x128xf32>
    %285 = tpu.matmul %284, %184, %cst_87 {dimension_numbers = #tpu.dot_dimension_numbers<[1], [0], [0], [1], [0, 0, 1, 1], [], []>} : vector<8x32xbf16>, vector<32x128xbf16>, vector<8x128xf32> -> vector<8x128xf32>
    %286 = arith.addf %283, %285 : vector<8x128xf32>
    %287 = arith.mulf %286, %8 : vector<8x128xf32>
    %288 = math.tanh %287 : vector<8x128xf32>
    %289 = arith.mulf %288, %8 : vector<8x128xf32>
    %290 = arith.addf %289, %11 : vector<8x128xf32>
    %291 = vector.extract_strided_slice %290 {offsets = [0, 0], sizes = [8, 32], strides = [1, 1]} : vector<8x128xf32> to vector<8x32xf32>
    %292 = vector.extract_strided_slice %290 {offsets = [0, 32], sizes = [8, 32], strides = [1, 1]} : vector<8x128xf32> to vector<8x32xf32>
    %293 = vector.extract_strided_slice %290 {offsets = [0, 64], sizes = [8, 32], strides = [1, 1]} : vector<8x128xf32> to vector<8x32xf32>
    %294 = vector.extract_strided_slice %290 {offsets = [0, 96], sizes = [8, 32], strides = [1, 1]} : vector<8x128xf32> to vector<8x32xf32>
    %295 = arith.mulf %292, %278 : vector<8x32xf32>
    %296 = arith.mulf %291, %293 : vector<8x32xf32>
    %297 = arith.addf %295, %296 : vector<8x32xf32>
    %298 = math.tanh %297 : vector<8x32xf32>
    %299 = arith.mulf %294, %298 : vector<8x32xf32>
    %c6_i32_88 = arith.constant 6 : i32
    %300 = arith.index_cast %c6_i32_88 : i32 to index
    %c0_89 = arith.constant 0 : index
    %c0_90 = arith.constant 0 : index
    %301 = vector.load %arg11[%300, %c0_89, %c0_90] : memref<7x8x128xf32, #tpu.memory_space<vmem>>, vector<1x8x128xf32>
    %302 = vector.shape_cast %301 : vector<1x8x128xf32> to vector<8x128xf32>
    %303 = arith.truncf %299 : vector<8x32xf32> to vector<8x32xbf16>
    %cst_91 = arith.constant dense<0.000000e+00> : vector<8x128xf32>
    %304 = tpu.matmul %303, %184, %cst_91 {dimension_numbers = #tpu.dot_dimension_numbers<[1], [0], [0], [1], [0, 0, 1, 1], [], []>} : vector<8x32xbf16>, vector<32x128xbf16>, vector<8x128xf32> -> vector<8x128xf32>
    %305 = arith.addf %302, %304 : vector<8x128xf32>
    %306 = arith.mulf %305, %8 : vector<8x128xf32>
    %307 = math.tanh %306 : vector<8x128xf32>
    %308 = arith.mulf %307, %8 : vector<8x128xf32>
    %309 = arith.addf %308, %11 : vector<8x128xf32>
    %310 = vector.extract_strided_slice %309 {offsets = [0, 0], sizes = [8, 32], strides = [1, 1]} : vector<8x128xf32> to vector<8x32xf32>
    %311 = vector.extract_strided_slice %309 {offsets = [0, 32], sizes = [8, 32], strides = [1, 1]} : vector<8x128xf32> to vector<8x32xf32>
    %312 = vector.extract_strided_slice %309 {offsets = [0, 64], sizes = [8, 32], strides = [1, 1]} : vector<8x128xf32> to vector<8x32xf32>
    %313 = vector.extract_strided_slice %309 {offsets = [0, 96], sizes = [8, 32], strides = [1, 1]} : vector<8x128xf32> to vector<8x32xf32>
    %314 = arith.mulf %311, %297 : vector<8x32xf32>
    %315 = arith.mulf %310, %312 : vector<8x32xf32>
    %316 = arith.addf %314, %315 : vector<8x32xf32>
    %317 = math.tanh %316 : vector<8x32xf32>
    %318 = arith.mulf %313, %317 : vector<8x32xf32>
    %c6_i32_92 = arith.constant 6 : i32
    %319 = arith.truncf %318 : vector<8x32xf32> to vector<8x32xbf16>
    %c0_93 = arith.constant 0 : index
    %c0_94 = arith.constant 0 : index
    %320 = vector.load %arg7[%c0_93, %c0_94] : memref<32x128xbf16, #tpu.memory_space<vmem>>, vector<32x128xbf16>
    %cst_95 = arith.constant dense<0.000000e+00> : vector<8x128xf32>
    %321 = tpu.matmul %319, %320, %cst_95 {dimension_numbers = #tpu.dot_dimension_numbers<[1], [0], [0], [1], [0, 0, 1, 1], [], []>} : vector<8x32xbf16>, vector<32x128xbf16>, vector<8x128xf32> -> vector<8x128xf32>
    %c0_96 = arith.constant 0 : index
    %c0_97 = arith.constant 0 : index
    %322 = vector.load %arg8[%c0_96, %c0_97] : memref<1x128xf32, #tpu.memory_space<vmem>>, vector<1x128xf32>
    %323 = vector.broadcast %322 : vector<1x128xf32> to vector<8x128xf32>
    %324 = arith.addf %321, %323 : vector<8x128xf32>
    %c0_98 = arith.constant 0 : index
    %c0_99 = arith.constant 0 : index
    %325 = vector.load %arg9[%c0_98, %c0_99] : memref<8x128xf32, #tpu.memory_space<vmem>>, vector<8x128xf32>
    tpu.vector_store %arg9[%c0_98, %c0_99], %324 {strides = array<i32>} : memref<8x128xf32, #tpu.memory_space<vmem>>, vector<8x128xf32>,
    return
  }
}

</mosaic_0001>

<llo_original>
// kernel: tpu_custom_call.1
$region0: #{tpu_custom_call.1}
  #allocation0 [shape = 'u32[]', space=smem, size = 0x4, offset = 0x4, fixed_abs, tag = 'smem constant byte address 0x4 - core index']
  #allocation1 [shape = 'u32[144,128]{1,0:T(1,128)}', space=vmem, size = 0x12000, scoped, tag = 'internal scratch']
  #allocation2 [shape = 'bf16[7,8,32]{2,1,0:T(8,128)(2,1)}', space=vmem, size = 0x3800, scoped, tag = 'scratch operand']
  #allocation3 [shape = 'f32[7,8,128]{2,1,0:T(8,128)}', space=vmem, size = 0x7000, scoped, tag = 'scratch operand']
  %s0 = inlined_call_operand.hbm [shape: f32[7,8,16], index: 0, kind: input, shape index: {}]
  %s1 = inlined_call_operand.hbm [shape: bf16[16,128], index: 1, kind: input, shape index: {}]
  %s2 = inlined_call_operand.hbm [shape: bf16[32,128], index: 2, kind: input, shape index: {}]
  %s3 = inlined_call_operand.vmem [shape: f32[1,128], index: 3, kind: input, shape index: {}]
  %s4 = inlined_call_operand.hbm [shape: bf16[32,128], index: 4, kind: input, shape index: {}]
  %s5 = inlined_call_operand.hbm [shape: bf16[32,128], index: 5, kind: input, shape index: {}]
  %s6 = inlined_call_operand.vmem [shape: f32[1,128], index: 6, kind: input, shape index: {}]
  %s7 = inlined_call_operand.hbm [shape: bf16[32,128], index: 7, kind: input, shape index: {}]
  %s8 = inlined_call_operand.vmem [shape: f32[1,128], index: 8, kind: input, shape index: {}]
  %s9 = inlined_call_operand.hbm [shape: f32[8,128], index: 9, kind: output, shape index: {}]
  %s10 = sld [smem:[#allocation0]]
  $region70: #{tpu_custom_call.1} parent=0
    _
  %s12 = ssub.s32 1, %s10
  %s13 = scalar_select 0, %s12, %s10
  $region1: #{tpu_custom_call.1} parent=0
    #allocation4 [shape = 'u8[28672]{0}', space=vmem, size = 0x7000, scoped, tag = 'input window, operand 0, single buffered']
    #allocation5 [shape = 's32[1]{0}', space=sflag, size = 0x4, scoped, tag = 'scoped memory for tpu_custom_call.1']
    #allocation6 [shape = 's32[1]{0}', space=sflag, size = 0x4, scoped, tag = 'scoped memory for tpu_custom_call.1']
    #allocation7 [shape = 'u8[4096]{0}', space=vmem, size = 0x1000, scoped, tag = 'input window, operand 1, single buffered']
    #allocation8 [shape = 's32[1]{0}', space=sflag, size = 0x4, scoped, tag = 'scoped memory for tpu_custom_call.1']
    #allocation9 [shape = 'u8[8192]{0}', space=vmem, size = 0x2000, scoped, tag = 'input window, operand 2, single buffered']
    #allocation10 [shape = 'u8[8192]{0}', space=vmem, size = 0x2000, scoped, tag = 'input window, operand 4, single buffered']
    #allocation11 [shape = 's32[1]{0}', space=sflag, size = 0x4, scoped, tag = 'scoped memory for tpu_custom_call.1']
    #allocation12 [shape = 'u8[8192]{0}', space=vmem, size = 0x2000, scoped, tag = 'input window, operand 5, single buffered']
    #allocation13 [shape = 'u8[8192]{0}', space=vmem, size = 0x2000, scoped, tag = 'input window, operand 7, single buffered']
    #allocation14 [shape = 's32[1]{0}', space=sflag, size = 0x4, scoped, tag = 'scoped memory for tpu_custom_call.1']
    #allocation15 [shape = 'u8[4096]{0}', space=vmem, size = 0x1000, scoped, tag = 'output window, operand 0, single buffered']
    %14 = vsyncpa [#allocation5], 0
    %15 = vsyncpa [#allocation8], 0
    %16 = vsyncpa [#allocation11], 0
    %17 = vsyncpa [#allocation14], 0
    %18 = vsyncpa [#allocation6], 0
    // Predicated region
    $region2: #{tpu_custom_call.1} parent=1 // pred_check
      _
    $region3: #{tpu_custom_call.1} parent=1 // pred_check_branch
      %20 = sbr.rel (0) target = $region5
    $region4: #{tpu_custom_call.1} parent=1 // pred_region
      %s22 = ssub.s32 896, 896
      %23 = vsyncadd [#allocation5], %s22
      %s24 = sshll.u32 [#allocation4], 4
      %s25 = int_to_ptr.vmem [resolvable:$true] %s24
      %30 = dma.hbm_to_vmem [thread:$0]  %s0, 896, %s25, [#allocation5], 128, 128, 8
    $region5: #{tpu_custom_call.1} parent=1 // pred_fallthru
      _
    // Predicated region
    $region6: #{tpu_custom_call.1} parent=1 // pred_check
      _
    $region7: #{tpu_custom_call.1} parent=1 // pred_check_branch
      %32 = sbr.rel (0) target = $region9
    $region8: #{tpu_custom_call.1} parent=1 // pred_region
      %s34 = ssub.s32 128, 128
      %35 = vsyncadd [#allocation8], %s34
      %s36 = sshll.u32 [#allocation7], 4
      %s37 = int_to_ptr.vmem [resolvable:$true] %s36
      %42 = dma.hbm_to_vmem [thread:$0]  %s1, 128, %s37, [#allocation8], 64, 64, 4
    $region9: #{tpu_custom_call.1} parent=1 // pred_fallthru
      _
    // Predicated region
    $region10: #{tpu_custom_call.1} parent=1 // pred_check
      _
    $region11: #{tpu_custom_call.1} parent=1 // pred_check_branch
      %44 = sbr.rel (0) target = $region13
    $region12: #{tpu_custom_call.1} parent=1 // pred_region
      %s46 = ssub.s32 256, 256
      %47 = vsyncadd [#allocation8], %s46
      %s48 = sshll.u32 [#allocation9], 4
      %s49 = int_to_ptr.vmem [resolvable:$true] %s48
      %54 = dma.hbm_to_vmem [thread:$0]  %s2, 256, %s49, [#allocation8], 64, 64, 4
    $region13: #{tpu_custom_call.1} parent=1 // pred_fallthru
      _
    // Predicated region
    $region14: #{tpu_custom_call.1} parent=1 // pred_check
      _
    $region15: #{tpu_custom_call.1} parent=1 // pred_check_branch
      %56 = sbr.rel (0) target = $region17
    $region16: #{tpu_custom_call.1} parent=1 // pred_region
      _
    $region17: #{tpu_custom_call.1} parent=1 // pred_fallthru
      _
    // Predicated region
    $region18: #{tpu_custom_call.1} parent=1 // pred_check
      _
    $region19: #{tpu_custom_call.1} parent=1 // pred_check_branch
      %58 = sbr.rel (0) target = $region21
    $region20: #{tpu_custom_call.1} parent=1 // pred_region
      %s60 = ssub.s32 256, 256
      %61 = vsyncadd [#allocation11], %s60
      %s62 = sshll.u32 [#allocation10], 4
      %s63 = int_to_ptr.vmem [resolvable:$true] %s62
      %68 = dma.hbm_to_vmem [thread:$0]  %s4, 256, %s63, [#allocation11], 64, 64, 4
    $region21: #{tpu_custom_call.1} parent=1 // pred_fallthru
      _
    // Predicated region
    $region22: #{tpu_custom_call.1} parent=1 // pred_check
      _
    $region23: #{tpu_custom_call.1} parent=1 // pred_check_branch
      %70 = sbr.rel (0) target = $region25
    $region24: #{tpu_custom_call.1} parent=1 // pred_region
      %s72 = ssub.s32 256, 256
      %73 = vsyncadd [#allocation11], %s72
      %s74 = sshll.u32 [#allocation12], 4
      %s75 = int_to_ptr.vmem [resolvable:$true] %s74
      %80 = dma.hbm_to_vmem [thread:$0]  %s5, 256, %s75, [#allocation11], 64, 64, 4
    $region25: #{tpu_custom_call.1} parent=1 // pred_fallthru
      _
    // Predicated region
    $region26: #{tpu_custom_call.1} parent=1 // pred_check
      _
    $region27: #{tpu_custom_call.1} parent=1 // pred_check_branch
      %82 = sbr.rel (0) target = $region29
    $region28: #{tpu_custom_call.1} parent=1 // pred_region
      _
    $region29: #{tpu_custom_call.1} parent=1 // pred_fallthru
      _
    // Predicated region
    $region30: #{tpu_custom_call.1} parent=1 // pred_check
      _
    $region31: #{tpu_custom_call.1} parent=1 // pred_check_branch
      %84 = sbr.rel (0) target = $region33
    $region32: #{tpu_custom_call.1} parent=1 // pred_region
      %s86 = ssub.s32 256, 256
      %87 = vsyncadd [#allocation14], %s86
      %s88 = sshll.u32 [#allocation13], 4
      %s89 = int_to_ptr.vmem [resolvable:$true] %s88
      %94 = dma.hbm_to_vmem [thread:$0]  %s7, 256, %s89, [#allocation14], 64, 64, 4
    $region33: #{tpu_custom_call.1} parent=1 // pred_fallthru
      _
    // Predicated region
    $region34: #{tpu_custom_call.1} parent=1 // pred_check
      _
    $region35: #{tpu_custom_call.1} parent=1 // pred_check_branch
      %96 = sbr.rel (0) target = $region37
    $region36: #{tpu_custom_call.1} parent=1 // pred_region
      _
    $region37: #{tpu_custom_call.1} parent=1 // pred_fallthru
      _
    // Predicated region
    $region38: #{tpu_custom_call.1} parent=1 // pred_check
      _
    $region39: #{tpu_custom_call.1} parent=1 // pred_check_branch
      %98 = sbr.rel (0) target = $region41
    $region40: #{tpu_custom_call.1} parent=1 // pred_region
      %99 = dma.done [#allocation5], 896
    $region41: #{tpu_custom_call.1} parent=1 // pred_fallthru
      _
    // Predicated region
    $region42: #{tpu_custom_call.1} parent=1 // pred_check
      _
    $region43: #{tpu_custom_call.1} parent=1 // pred_check_branch
      %101 = sbr.rel (0) target = $region45
    $region44: #{tpu_custom_call.1} parent=1 // pred_region
      %102 = dma.done [#allocation8], 128
    $region45: #{tpu_custom_call.1} parent=1 // pred_fallthru
      _
    // Predicated region
    $region46: #{tpu_custom_call.1} parent=1 // pred_check
      _
    $region47: #{tpu_custom_call.1} parent=1 // pred_check_branch
      %104 = sbr.rel (0) target = $region49
    $region48: #{tpu_custom_call.1} parent=1 // pred_region
      %105 = dma.done [#allocation8], 256
    $region49: #{tpu_custom_call.1} parent=1 // pred_fallthru
      _
    // Predicated region
    $region50: #{tpu_custom_call.1} parent=1 // pred_check
      _
    $region51: #{tpu_custom_call.1} parent=1 // pred_check_branch
      %107 = sbr.rel (0) target = $region53
    $region52: #{tpu_custom_call.1} parent=1 // pred_region
      %108 = dma.done [#allocation11], 256
    $region53: #{tpu_custom_call.1} parent=1 // pred_fallthru
      _
    // Predicated region
    $region54: #{tpu_custom_call.1} parent=1 // pred_check
      _
    $region55: #{tpu_custom_call.1} parent=1 // pred_check_branch
      %110 = sbr.rel (0) target = $region57
    $region56: #{tpu_custom_call.1} parent=1 // pred_region
      %111 = dma.done [#allocation11], 256
    $region57: #{tpu_custom_call.1} parent=1 // pred_fallthru
      _
    // Predicated region
    $region58: #{tpu_custom_call.1} parent=1 // pred_check
      _
    $region59: #{tpu_custom_call.1} parent=1 // pred_check_branch
      %113 = sbr.rel (0) target = $region61
    $region60: #{tpu_custom_call.1} parent=1 // pred_region
      %114 = dma.done [#allocation14], 256
    $region61: #{tpu_custom_call.1} parent=1 // pred_fallthru
      _
    %v116 = vlaneseq
    %v117 = vand.u32 %v116, 127
    %vm118 = vcmp.ge.s32.totalorder %v117, 64
    %vm119 = vcmp.lt.s32.totalorder %v117, 96
    %vm120 = vmand %vm118, %vm119
    %v121 = vsel %vm120, 1.0, 0.5
    %v122 = vsel %vm120, 0.0, 0.5
    %v123 = vld [vmem:[#allocation7] sm:$0xf]
    %v124 = vld [vmem:[#allocation7 + $0x4] sm:$0xf]
    %v125 = vld [vmem:[#allocation9] sm:$0xf]
    %v126 = vld [vmem:[#allocation9 + $0x4] sm:$0xf]
    %v127 = vld [vmem:[#allocation9 + $0x8] sm:$0xf]
    %v128 = vld [vmem:[#allocation9 + $0xc] sm:$0xf]
    %v129 = vld [vmem:[%s3] sm:$0x1]
    %v130 = vld [vmem:[#allocation4] sm:$0xff]
    %v131 = vld [vmem:[#allocation4 + $0x8] sm:$0xff]
    %v132 = vld [vmem:[#allocation4 + $0x10] sm:$0xff]
    %v133 = vld [vmem:[#allocation4 + $0x18] sm:$0xff]
    %v134 = vld [vmem:[#allocation4 + $0x20] sm:$0xff]
    %v135 = vld [vmem:[#allocation4 + $0x28] sm:$0xff]
    %v136 = vld [vmem:[#allocation4 + $0x30] sm:$0xff]
    %v137 = vpack.c.bf16 %v131, %v130
    %v138 = vpack.c.bf16 %v133, %v132
    %v139 = vpack.c.bf16 %v135, %v134
    %v140 = vpack.c.bf16 %v136, %v136
    %v142 = vlaneseq
    %v143 = vshrl.u32 %v142, 7
    %v144 = vsub.s32 0, %v143
    %v145 = vrot.slane %v129, %v144
    %v149 = vunpack.c.l.b16 %v123
    %v150 = vunpack.c.l.b16 %v124
    %v151 = vpack.c.b16 %v150, %v149
    %vm153 = vcmask 130048
    %v155 = vsel %vm153, %v137, 0
    %v158 = vsel %vm153, %v138, 0
    %v161 = vsel %vm153, %v139, 0
    %v164 = vsel %vm153, %v140, 0
    %166 = vmatprep.subr.bf16.mxu0 0
    %167 = vmatpush1.bf16.msra.mxu0 0
    %168 = vmatprep.subr.bf16.mxu0 0
    %169 = vmatpush1.bf16.msra.mxu0 0
    %170 = vmatprep.subr.bf16.mxu0 0
    %171 = vmatpush1.bf16.msra.mxu0 0
    %172 = vmatprep.subr.bf16.mxu0 0
    %173 = vmatpush1.bf16.msra.mxu0 0
    %174 = vmatprep.subr.bf16.mxu0 0
    %175 = vmatpush1.bf16.msra.mxu0 0
    %176 = vmatprep.subr.bf16.mxu0 0
    %177 = vmatpush1.bf16.msra.mxu0 0
    %178 = vmatprep.subr.bf16.mxu0 0
    %179 = vmatpush1.bf16.msra.mxu0 0
    %180 = vmatprep.subr.bf16.mxu0 0
    %181 = vmatpush1.bf16.msra.mxu0 %v151
    %182 = vmatprep.subr.bf16.mxu0 0
    %183 = vmatpush2.bf16.msra.mxu0 0
    %184 = vmatprep.subr.bf16.mxu0 0
    %185 = vmatpush2.bf16.msra.mxu0 0
    %186 = vmatprep.subr.bf16.mxu0 0
    %187 = vmatpush2.bf16.msra.mxu0 0
    %188 = vmatprep.subr.bf16.mxu0 0
    %189 = vmatpush2.bf16.msra.mxu0 0
    %190 = vmatprep.subr.bf16.mxu0 0
    %191 = vmatpush2.bf16.msra.mxu0 0
    %192 = vmatprep.subr.bf16.mxu0 0
    %193 = vmatpush2.bf16.msra.mxu0 0
    %194 = vmatprep.subr.bf16.mxu0 0
    %195 = vmatpush2.bf16.msra.mxu0 0
    %196 = vmatprep.subr.bf16.mxu0 0
    %197 = vmatpush2.bf16.msra.mxu0 0
    %198 = vmatprep.mubr.bf16.mxu0 0
    %199 = vmatmul.mubr.bf16.gmra.mxu0 %v155
    %v200 = vpop.f32.mrf.mxu0
    %v201 = vadd.f32 %v145, %v200
    %v202 = vpop.f32.mrf.mxu0
    %v203 = vpop.f32.mrf.mxu0
    %v204 = vadd.f32 %v145, %v203
    %v205 = vpop.f32.mrf.mxu0
    %206 = vmatprep.mubr.bf16.mxu0 0
    %207 = vmatmul.mubr.bf16.gmra.mxu0 %v158
    %v208 = vpop.f32.mrf.mxu0
    %v209 = vadd.f32 %v145, %v208
    %v210 = vpop.f32.mrf.mxu0
    %v211 = vpop.f32.mrf.mxu0
    %v212 = vadd.f32 %v145, %v211
    %v213 = vpop.f32.mrf.mxu0
    %214 = vmatprep.mubr.bf16.mxu0 0
    %215 = vmatmul.mubr.bf16.gmra.mxu0 %v161
    %v216 = vpop.f32.mrf.mxu0
    %v217 = vadd.f32 %v145, %v216
    %v218 = vpop.f32.mrf.mxu0
    %v219 = vpop.f32.mrf.mxu0
    %v220 = vadd.f32 %v145, %v219
    %v221 = vpop.f32.mrf.mxu0
    %222 = vmatprep.mubr.bf16.mxu0 0
    %223 = vmatmul.mubr.bf16.gmra.mxu0 %v164
    %v224 = vpop.f32.mrf.mxu0
    %v225 = vadd.f32 %v145, %v224
    %v226 = vpop.f32.mrf.mxu0
    %v227 = vpop.f32.mrf.mxu0
    %v228 = vpop.f32.mrf.mxu0
    %229 = vdwg.mxu0
    %230 = vst [vmem:[#allocation3] sm:$0xff] %v201
    %231 = vst [vmem:[#allocation3 + $0x8] sm:$0xff] %v204
    %232 = vst [vmem:[#allocation3 + $0x10] sm:$0xff] %v209
    %233 = vst [vmem:[#allocation3 + $0x18] sm:$0xff] %v212
    %234 = vst [vmem:[#allocation3 + $0x20] sm:$0xff] %v217
    %235 = vst [vmem:[#allocation3 + $0x28] sm:$0xff] %v220
    %236 = vst [vmem:[#allocation3 + $0x30] sm:$0xff] %v225
    %v237 = vld [vmem:[#allocation3] sm:$0xff]
    %v238 = vmul.f32 %v237, %v121
    %v239 = vtanh.pop %v238
    %v240 = vmul.f32 %v239, %v121
    %v241 = vadd.f32 %v240, %v122
    %243 = vrot.lane.b32.xlu0 %v241, 64
    %v244 = vpop.permute.xlu0 %243
    %v246 = vmul.f32 %v241, %v244
    %v247 = vtanh.pop %v246
    %249 = vrot.lane.b32.xlu0 %v247, 96
    %v250 = vpop.permute.xlu0 %249
    %v252 = vmul.f32 %v241, %v250
    %v253 = vpack.c.bf16 %v252, %v252
    %v255 = vunpack.c.l.b16 %v253
    %v256 = vpack.c.b16 %v255, %v255
    %257 = vrot.lane.b32.xlu0 %v256, 32
    %v258 = vpop.permute.xlu0 %257
    %vm260 = vcmask 257024
    %261 = vst.msk [vmem:[#allocation2] sm:$0xf] %vm260, %v258
    %s262 = scalar_lea.vmem [#allocation3], 8
    %v263 = vld [vmem:[%s262] sm:$0xff]
    %264 = vrot.lane.b32.xlu0 %v253, 32
    %v265 = vpop.permute.xlu0 %264
    %v270 = vunpack.c.l.b16 %v125
    %v271 = vunpack.c.l.b16 %v126
    %v272 = vunpack.c.l.b16 %v127
    %v273 = vunpack.c.l.b16 %v128
    %v274 = vpack.c.b16 %v271, %v270
    %v275 = vpack.c.b16 %v273, %v272
    %vm278 = vcmask 261120
    %v280 = vsel %vm278, %v265, 0
    %282 = vmatprep.subr.bf16.mxu0 0
    %283 = vmatpush1.bf16.msra.mxu0 0
    %284 = vmatprep.subr.bf16.mxu0 0
    %285 = vmatpush1.bf16.msra.mxu0 0
    %286 = vmatprep.subr.bf16.mxu0 0
    %287 = vmatpush1.bf16.msra.mxu0 0
    %288 = vmatprep.subr.bf16.mxu0 0
    %289 = vmatpush1.bf16.msra.mxu0 0
    %290 = vmatprep.subr.bf16.mxu0 0
    %291 = vmatpush1.bf16.msra.mxu0 0
    %292 = vmatprep.subr.bf16.mxu0 0
    %293 = vmatpush1.bf16.msra.mxu0 0
    %294 = vmatprep.subr.bf16.mxu0 0
    %295 = vmatpush1.bf16.msra.mxu0 %v275
    %296 = vmatprep.subr.bf16.mxu0 0
    %297 = vmatpush1.bf16.msra.mxu0 %v274
    %298 = vmatprep.subr.bf16.mxu0 0
    %299 = vmatpush2.bf16.msra.mxu0 0
    %300 = vmatprep.subr.bf16.mxu0 0
    %301 = vmatpush2.bf16.msra.mxu0 0
    %302 = vmatprep.subr.bf16.mxu0 0
    %303 = vmatpush2.bf16.msra.mxu0 0
    %304 = vmatprep.subr.bf16.mxu0 0
    %305 = vmatpush2.bf16.msra.mxu0 0
    %306 = vmatprep.subr.bf16.mxu0 0
    %307 = vmatpush2.bf16.msra.mxu0 0
    %308 = vmatprep.subr.bf16.mxu0 0
    %309 = vmatpush2.bf16.msra.mxu0 0
    %310 = vmatprep.subr.bf16.mxu0 0
    %311 = vmatpush2.bf16.msra.mxu0 0
    %312 = vmatprep.subr.bf16.mxu0 0
    %313 = vmatpush2.bf16.msra.mxu0 0
    %314 = vmatprep.mubr.bf16.mxu0 0
    %315 = vmatmul.mubr.bf16.gmra.mxu0 %v280
    %v316 = vpop.f32.mrf.mxu0
    %v317 = vadd.f32 0.0, %v316
    %v318 = vpop.f32.mrf.mxu0
    %v319 = vpop.f32.mrf.mxu0
    %v320 = vpop.f32.mrf.mxu0
    %321 = vdwg.mxu0
    %v322 = vadd.f32 %v263, %v317
    %v323 = vmul.f32 %v322, %v121
    %v324 = vtanh.pop %v323
    %v325 = vmul.f32 %v324, %v121
    %v326 = vadd.f32 %v325, %v122
    %328 = vrot.lane.b32.xlu0 %v246, 32
    %v329 = vpop.permute.xlu0 %328
    %v331 = vmul.f32 %v326, %v329
    %333 = vrot.lane.b32.xlu0 %v326, 64
    %v334 = vpop.permute.xlu0 %333
    %v336 = vmul.f32 %v326, %v334
    %338 = vrot.lane.b32.xlu0 %v336, 32
    %v339 = vpop.permute.xlu0 %338
    %v341 = vadd.f32 %v331, %v339
    %v342 = vtanh.pop %v341
    %344 = vrot.lane.b32.xlu0 %v342, 64
    %v345 = vpop.permute.xlu0 %344
    %v347 = vmul.f32 %v326, %v345
    %v348 = vpack.c.bf16 %v347, %v347
    %v350 = vunpack.c.l.b16 %v348
    %v351 = vpack.c.b16 %v350, %v350
    %352 = vrot.lane.b32.xlu0 %v351, 32
    %v353 = vpop.permute.xlu0 %352
    %s355 = scalar_lea.vmem [#allocation2], 4
    %356 = vst.msk [vmem:[%s355] sm:$0xf] %vm260, %v353
    %s357 = scalar_lea.vmem [#allocation3], 16
    %v358 = vld [vmem:[%s357] sm:$0xff]
    %359 = vrot.lane.b32.xlu0 %v348, 32
    %v360 = vpop.permute.xlu0 %359
    %v362 = vsel %vm278, %v360, 0
    %364 = vmatprep.subr.bf16.mxu0 0
    %365 = vmatpush1.bf16.msra.mxu0 0
    %366 = vmatprep.subr.bf16.mxu0 0
    %367 = vmatpush1.bf16.msra.mxu0 0
    %368 = vmatprep.subr.bf16.mxu0 0
    %369 = vmatpush1.bf16.msra.mxu0 0
    %370 = vmatprep.subr.bf16.mxu0 0
    %371 = vmatpush1.bf16.msra.mxu0 0
    %372 = vmatprep.subr.bf16.mxu0 0
    %373 = vmatpush1.bf16.msra.mxu0 0
    %374 = vmatprep.subr.bf16.mxu0 0
    %375 = vmatpush1.bf16.msra.mxu0 0
    %376 = vmatprep.subr.bf16.mxu0 0
    %377 = vmatpush1.bf16.msra.mxu0 %v275
    %378 = vmatprep.subr.bf16.mxu0 0
    %379 = vmatpush1.bf16.msra.mxu0 %v274
    %380 = vmatprep.subr.bf16.mxu0 0
    %381 = vmatpush2.bf16.msra.mxu0 0
    %382 = vmatprep.subr.bf16.mxu0 0
    %383 = vmatpush2.bf16.msra.mxu0 0
    %384 = vmatprep.subr.bf16.mxu0 0
    %385 = vmatpush2.bf16.msra.mxu0 0
    %386 = vmatprep.subr.bf16.mxu0 0
    %387 = vmatpush2.bf16.msra.mxu0 0
    %388 = vmatprep.subr.bf16.mxu0 0
    %389 = vmatpush2.bf16.msra.mxu0 0
    %390 = vmatprep.subr.bf16.mxu0 0
    %391 = vmatpush2.bf16.msra.mxu0 0
    %392 = vmatprep.subr.bf16.mxu0 0
    %393 = vmatpush2.bf16.msra.mxu0 0
    %394 = vmatprep.subr.bf16.mxu0 0
    %395 = vmatpush2.bf16.msra.mxu0 0
    %396 = vmatprep.mubr.bf16.mxu0 0
    %397 = vmatmul.mubr.bf16.gmra.mxu0 %v362
    %v398 = vpop.f32.mrf.mxu0
    %v399 = vadd.f32 0.0, %v398
    %v400 = vpop.f32.mrf.mxu0
    %v401 = vpop.f32.mrf.mxu0
    %v402 = vpop.f32.mrf.mxu0
    %403 = vdwg.mxu0
    %v404 = vadd.f32 %v358, %v399
    %v405 = vmul.f32 %v404, %v121
    %v406 = vtanh.pop %v405
    %v407 = vmul.f32 %v406, %v121
    %v408 = vadd.f32 %v407, %v122
    %v409 = vmul.f32 %v408, %v341
    %411 = vrot.lane.b32.xlu0 %v408, 64
    %v412 = vpop.permute.xlu0 %411
    %v414 = vmul.f32 %v408, %v412
    %416 = vrot.lane.b32.xlu0 %v414, 32
    %v417 = vpop.permute.xlu0 %416
    %v419 = vadd.f32 %v409, %v417
    %v420 = vtanh.pop %v419
    %422 = vrot.lane.b32.xlu0 %v420, 64
    %v423 = vpop.permute.xlu0 %422
    %v425 = vmul.f32 %v408, %v423
    %v426 = vpack.c.bf16 %v425, %v425
    %v428 = vunpack.c.l.b16 %v426
    %v429 = vpack.c.b16 %v428, %v428
    %430 = vrot.lane.b32.xlu0 %v429, 32
    %v431 = vpop.permute.xlu0 %430
    %s433 = scalar_lea.vmem [#allocation2], 8
    %434 = vst.msk [vmem:[%s433] sm:$0xf] %vm260, %v431
    %s435 = scalar_lea.vmem [#allocation3], 24
    %v436 = vld [vmem:[%s435] sm:$0xff]
    %437 = vrot.lane.b32.xlu0 %v426, 32
    %v438 = vpop.permute.xlu0 %437
    %v440 = vsel %vm278, %v438, 0
    %442 = vmatprep.subr.bf16.mxu0 0
    %443 = vmatpush1.bf16.msra.mxu0 0
    %444 = vmatprep.subr.bf16.mxu0 0
    %445 = vmatpush1.bf16.msra.mxu0 0
    %446 = vmatprep.subr.bf16.mxu0 0
    %447 = vmatpush1.bf16.msra.mxu0 0
    %448 = vmatprep.subr.bf16.mxu0 0
    %449 = vmatpush1.bf16.msra.mxu0 0
    %450 = vmatprep.subr.bf16.mxu0 0
    %451 = vmatpush1.bf16.msra.mxu0 0
    %452 = vmatprep.subr.bf16.mxu0 0
    %453 = vmatpush1.bf16.msra.mxu0 0
    %454 = vmatprep.subr.bf16.mxu0 0
    %455 = vmatpush1.bf16.msra.mxu0 %v275
    %456 = vmatprep.subr.bf16.mxu0 0
    %457 = vmatpush1.bf16.msra.mxu0 %v274
    %458 = vmatprep.subr.bf16.mxu0 0
    %459 = vmatpush2.bf16.msra.mxu0 0
    %460 = vmatprep.subr.bf16.mxu0 0
    %461 = vmatpush2.bf16.msra.mxu0 0
    %462 = vmatprep.subr.bf16.mxu0 0
    %463 = vmatpush2.bf16.msra.mxu0 0
    %464 = vmatprep.subr.bf16.mxu0 0
    %465 = vmatpush2.bf16.msra.mxu0 0
    %466 = vmatprep.subr.bf16.mxu0 0
    %467 = vmatpush2.bf16.msra.mxu0 0
    %468 = vmatprep.subr.bf16.mxu0 0
    %469 = vmatpush2.bf16.msra.mxu0 0
    %470 = vmatprep.subr.bf16.mxu0 0
    %471 = vmatpush2.bf16.msra.mxu0 0
    %472 = vmatprep.subr.bf16.mxu0 0
    %473 = vmatpush2.bf16.msra.mxu0 0
    %474 = vmatprep.mubr.bf16.mxu0 0
    %475 = vmatmul.mubr.bf16.gmra.mxu0 %v440
    %v476 = vpop.f32.mrf.mxu0
    %v477 = vadd.f32 0.0, %v476
    %v478 = vpop.f32.mrf.mxu0
    %v479 = vpop.f32.mrf.mxu0
    %v480 = vpop.f32.mrf.mxu0
    %481 = vdwg.mxu0
    %v482 = vadd.f32 %v436, %v477
    %v483 = vmul.f32 %v482, %v121
    %v484 = vtanh.pop %v483
    %v485 = vmul.f32 %v484, %v121
    %v486 = vadd.f32 %v485, %v122
    %v487 = vmul.f32 %v486, %v419
    %489 = vrot.lane.b32.xlu0 %v486, 64
    %v490 = vpop.permute.xlu0 %489
    %v492 = vmul.f32 %v486, %v490
    %494 = vrot.lane.b32.xlu0 %v492, 32
    %v495 = vpop.permute.xlu0 %494
    %v497 = vadd.f32 %v487, %v495
    %v498 = vtanh.pop %v497
    %500 = vrot.lane.b32.xlu0 %v498, 64
    %v501 = vpop.permute.xlu0 %500
    %v503 = vmul.f32 %v486, %v501
    %v504 = vpack.c.bf16 %v503, %v503
    %v506 = vunpack.c.l.b16 %v504
    %v507 = vpack.c.b16 %v506, %v506
    %508 = vrot.lane.b32.xlu0 %v507, 32
    %v509 = vpop.permute.xlu0 %508
    %s511 = scalar_lea.vmem [#allocation2], 12
    %512 = vst.msk [vmem:[%s511] sm:$0xf] %vm260, %v509
    %s513 = scalar_lea.vmem [#allocation3], 32
    %v514 = vld [vmem:[%s513] sm:$0xff]
    %515 = vrot.lane.b32.xlu0 %v504, 32
    %v516 = vpop.permute.xlu0 %515
    %v518 = vsel %vm278, %v516, 0
    %520 = vmatprep.subr.bf16.mxu0 0
    %521 = vmatpush1.bf16.msra.mxu0 0
    %522 = vmatprep.subr.bf16.mxu0 0
    %523 = vmatpush1.bf16.msra.mxu0 0
    %524 = vmatprep.subr.bf16.mxu0 0
    %525 = vmatpush1.bf16.msra.mxu0 0
    %526 = vmatprep.subr.bf16.mxu0 0
    %527 = vmatpush1.bf16.msra.mxu0 0
    %528 = vmatprep.subr.bf16.mxu0 0
    %529 = vmatpush1.bf16.msra.mxu0 0
    %530 = vmatprep.subr.bf16.mxu0 0
    %531 = vmatpush1.bf16.msra.mxu0 0
    %532 = vmatprep.subr.bf16.mxu0 0
    %533 = vmatpush1.bf16.msra.mxu0 %v275
    %534 = vmatprep.subr.bf16.mxu0 0
    %535 = vmatpush1.bf16.msra.mxu0 %v274
    %536 = vmatprep.subr.bf16.mxu0 0
    %537 = vmatpush2.bf16.msra.mxu0 0
    %538 = vmatprep.subr.bf16.mxu0 0
    %539 = vmatpush2.bf16.msra.mxu0 0
    %540 = vmatprep.subr.bf16.mxu0 0
    %541 = vmatpush2.bf16.msra.mxu0 0
    %542 = vmatprep.subr.bf16.mxu0 0
    %543 = vmatpush2.bf16.msra.mxu0 0
    %544 = vmatprep.subr.bf16.mxu0 0
    %545 = vmatpush2.bf16.msra.mxu0 0
    %546 = vmatprep.subr.bf16.mxu0 0
    %547 = vmatpush2.bf16.msra.mxu0 0
    %548 = vmatprep.subr.bf16.mxu0 0
    %549 = vmatpush2.bf16.msra.mxu0 0
    %550 = vmatprep.subr.bf16.mxu0 0
    %551 = vmatpush2.bf16.msra.mxu0 0
    %552 = vmatprep.mubr.bf16.mxu0 0
    %553 = vmatmul.mubr.bf16.gmra.mxu0 %v518
    %v554 = vpop.f32.mrf.mxu0
    %v555 = vadd.f32 0.0, %v554
    %v556 = vpop.f32.mrf.mxu0
    %v557 = vpop.f32.mrf.mxu0
    %v558 = vpop.f32.mrf.mxu0
    %559 = vdwg.mxu0
    %v560 = vadd.f32 %v514, %v555
    %v561 = vmul.f32 %v560, %v121
    %v562 = vtanh.pop %v561
    %v563 = vmul.f32 %v562, %v121
    %v564 = vadd.f32 %v563, %v122
    %v565 = vmul.f32 %v564, %v497
    %567 = vrot.lane.b32.xlu0 %v564, 64
    %v568 = vpop.permute.xlu0 %567
    %v570 = vmul.f32 %v564, %v568
    %572 = vrot.lane.b32.xlu0 %v570, 32
    %v573 = vpop.permute.xlu0 %572
    %v575 = vadd.f32 %v565, %v573
    %v576 = vtanh.pop %v575
    %578 = vrot.lane.b32.xlu0 %v576, 64
    %v579 = vpop.permute.xlu0 %578
    %v581 = vmul.f32 %v564, %v579
    %v582 = vpack.c.bf16 %v581, %v581
    %v584 = vunpack.c.l.b16 %v582
    %v585 = vpack.c.b16 %v584, %v584
    %586 = vrot.lane.b32.xlu0 %v585, 32
    %v587 = vpop.permute.xlu0 %586
    %s589 = scalar_lea.vmem [#allocation2], 16
    %590 = vst.msk [vmem:[%s589] sm:$0xf] %vm260, %v587
    %s591 = scalar_lea.vmem [#allocation3], 40
    %v592 = vld [vmem:[%s591] sm:$0xff]
    %593 = vrot.lane.b32.xlu0 %v582, 32
    %v594 = vpop.permute.xlu0 %593
    %v596 = vsel %vm278, %v594, 0
    %598 = vmatprep.subr.bf16.mxu0 0
    %599 = vmatpush1.bf16.msra.mxu0 0
    %600 = vmatprep.subr.bf16.mxu0 0
    %601 = vmatpush1.bf16.msra.mxu0 0
    %602 = vmatprep.subr.bf16.mxu0 0
    %603 = vmatpush1.bf16.msra.mxu0 0
    %604 = vmatprep.subr.bf16.mxu0 0
    %605 = vmatpush1.bf16.msra.mxu0 0
    %606 = vmatprep.subr.bf16.mxu0 0
    %607 = vmatpush1.bf16.msra.mxu0 0
    %608 = vmatprep.subr.bf16.mxu0 0
    %609 = vmatpush1.bf16.msra.mxu0 0
    %610 = vmatprep.subr.bf16.mxu0 0
    %611 = vmatpush1.bf16.msra.mxu0 %v275
    %612 = vmatprep.subr.bf16.mxu0 0
    %613 = vmatpush1.bf16.msra.mxu0 %v274
    %614 = vmatprep.subr.bf16.mxu0 0
    %615 = vmatpush2.bf16.msra.mxu0 0
    %616 = vmatprep.subr.bf16.mxu0 0
    %617 = vmatpush2.bf16.msra.mxu0 0
    %618 = vmatprep.subr.bf16.mxu0 0
    %619 = vmatpush2.bf16.msra.mxu0 0
    %620 = vmatprep.subr.bf16.mxu0 0
    %621 = vmatpush2.bf16.msra.mxu0 0
    %622 = vmatprep.subr.bf16.mxu0 0
    %623 = vmatpush2.bf16.msra.mxu0 0
    %624 = vmatprep.subr.bf16.mxu0 0
    %625 = vmatpush2.bf16.msra.mxu0 0
    %626 = vmatprep.subr.bf16.mxu0 0
    %627 = vmatpush2.bf16.msra.mxu0 0
    %628 = vmatprep.subr.bf16.mxu0 0
    %629 = vmatpush2.bf16.msra.mxu0 0
    %630 = vmatprep.mubr.bf16.mxu0 0
    %631 = vmatmul.mubr.bf16.gmra.mxu0 %v596
    %v632 = vpop.f32.mrf.mxu0
    %v633 = vadd.f32 0.0, %v632
    %v634 = vpop.f32.mrf.mxu0
    %v635 = vpop.f32.mrf.mxu0
    %v636 = vpop.f32.mrf.mxu0
    %637 = vdwg.mxu0
    %v638 = vadd.f32 %v592, %v633
    %v639 = vmul.f32 %v638, %v121
    %v640 = vtanh.pop %v639
    %v641 = vmul.f32 %v640, %v121
    %v642 = vadd.f32 %v641, %v122
    %v643 = vmul.f32 %v642, %v575
    %645 = vrot.lane.b32.xlu0 %v642, 64
    %v646 = vpop.permute.xlu0 %645
    %v648 = vmul.f32 %v642, %v646
    %650 = vrot.lane.b32.xlu0 %v648, 32
    %v651 = vpop.permute.xlu0 %650
    %v653 = vadd.f32 %v643, %v651
    %v654 = vtanh.pop %v653
    %656 = vrot.lane.b32.xlu0 %v654, 64
    %v657 = vpop.permute.xlu0 %656
    %v659 = vmul.f32 %v642, %v657
    %v660 = vpack.c.bf16 %v659, %v659
    %v662 = vunpack.c.l.b16 %v660
    %v663 = vpack.c.b16 %v662, %v662
    %664 = vrot.lane.b32.xlu0 %v663, 32
    %v665 = vpop.permute.xlu0 %664
    %s667 = scalar_lea.vmem [#allocation2], 20
    %668 = vst.msk [vmem:[%s667] sm:$0xf] %vm260, %v665
    %s669 = scalar_lea.vmem [#allocation3], 48
    %v670 = vld [vmem:[%s669] sm:$0xff]
    %671 = vrot.lane.b32.xlu0 %v660, 32
    %v672 = vpop.permute.xlu0 %671
    %v674 = vsel %vm278, %v672, 0
    %676 = vmatprep.subr.bf16.mxu0 0
    %677 = vmatpush1.bf16.msra.mxu0 0
    %678 = vmatprep.subr.bf16.mxu0 0
    %679 = vmatpush1.bf16.msra.mxu0 0
    %680 = vmatprep.subr.bf16.mxu0 0
    %681 = vmatpush1.bf16.msra.mxu0 0
    %682 = vmatprep.subr.bf16.mxu0 0
    %683 = vmatpush1.bf16.msra.mxu0 0
    %684 = vmatprep.subr.bf16.mxu0 0
    %685 = vmatpush1.bf16.msra.mxu0 0
    %686 = vmatprep.subr.bf16.mxu0 0
    %687 = vmatpush1.bf16.msra.mxu0 0
    %688 = vmatprep.subr.bf16.mxu0 0
    %689 = vmatpush1.bf16.msra.mxu0 %v275
    %690 = vmatprep.subr.bf16.mxu0 0
    %691 = vmatpush1.bf16.msra.mxu0 %v274
    %692 = vmatprep.subr.bf16.mxu0 0
    %693 = vmatpush2.bf16.msra.mxu0 0
    %694 = vmatprep.subr.bf16.mxu0 0
    %695 = vmatpush2.bf16.msra.mxu0 0
    %696 = vmatprep.subr.bf16.mxu0 0
    %697 = vmatpush2.bf16.msra.mxu0 0
    %698 = vmatprep.subr.bf16.mxu0 0
    %699 = vmatpush2.bf16.msra.mxu0 0
    %700 = vmatprep.subr.bf16.mxu0 0
    %701 = vmatpush2.bf16.msra.mxu0 0
    %702 = vmatprep.subr.bf16.mxu0 0
    %703 = vmatpush2.bf16.msra.mxu0 0
    %704 = vmatprep.subr.bf16.mxu0 0
    %705 = vmatpush2.bf16.msra.mxu0 0
    %706 = vmatprep.subr.bf16.mxu0 0
    %707 = vmatpush2.bf16.msra.mxu0 0
    %708 = vmatprep.mubr.bf16.mxu0 0
    %709 = vmatmul.mubr.bf16.gmra.mxu0 %v674
    %v710 = vpop.f32.mrf.mxu0
    %v711 = vadd.f32 0.0, %v710
    %v712 = vpop.f32.mrf.mxu0
    %v713 = vpop.f32.mrf.mxu0
    %v714 = vpop.f32.mrf.mxu0
    %715 = vdwg.mxu0
    %v716 = vadd.f32 %v670, %v711
    %v717 = vmul.f32 %v716, %v121
    %v718 = vtanh.pop %v717
    %v719 = vmul.f32 %v718, %v121
    %v720 = vadd.f32 %v719, %v122
    %v721 = vmul.f32 %v720, %v653
    %723 = vrot.lane.b32.xlu0 %v720, 64
    %v724 = vpop.permute.xlu0 %723
    %v726 = vmul.f32 %v720, %v724
    %728 = vrot.lane.b32.xlu0 %v726, 32
    %v729 = vpop.permute.xlu0 %728
    %v731 = vadd.f32 %v721, %v729
    %v732 = vtanh.pop %v731
    %734 = vrot.lane.b32.xlu0 %v732, 64
    %v735 = vpop.permute.xlu0 %734
    %v737 = vmul.f32 %v720, %v735
    %v738 = vpack.c.bf16 %v737, %v737
    %v740 = vunpack.c.l.b16 %v738
    %v741 = vpack.c.b16 %v740, %v740
    %742 = vrot.lane.b32.xlu0 %v741, 32
    %v743 = vpop.permute.xlu0 %742
    %s745 = scalar_lea.vmem [#allocation2], 24
    %746 = vst.msk [vmem:[%s745] sm:$0xf] %vm260, %v743
    %v747 = vld [vmem:[#allocation10] sm:$0xf]
    %v748 = vld [vmem:[#allocation10 + $0x4] sm:$0xf]
    %v749 = vld [vmem:[#allocation10 + $0x8] sm:$0xf]
    %v750 = vld [vmem:[#allocation10 + $0xc] sm:$0xf]
    %v751 = vld [vmem:[#allocation12] sm:$0xf]
    %v752 = vld [vmem:[#allocation12 + $0x4] sm:$0xf]
    %v753 = vld [vmem:[#allocation12 + $0x8] sm:$0xf]
    %v754 = vld [vmem:[#allocation12 + $0xc] sm:$0xf]
    %v755 = vld [vmem:[%s6] sm:$0x1]
    %v756 = vld [vmem:[#allocation2] sm:$0xf]
    %v757 = vld [vmem:[#allocation2 + $0x4] sm:$0xf]
    %v758 = vld [vmem:[#allocation2 + $0x8] sm:$0xf]
    %v759 = vld [vmem:[#allocation2 + $0xc] sm:$0xf]
    %v760 = vld [vmem:[#allocation2 + $0x10] sm:$0xf]
    %v761 = vld [vmem:[#allocation2 + $0x14] sm:$0xf]
    %v762 = vld [vmem:[#allocation2 + $0x18] sm:$0xf]
    %v764 = vlaneseq
    %v765 = vshrl.u32 %v764, 7
    %v766 = vsub.s32 0, %v765
    %v767 = vrot.slane %v755, %v766
    %v776 = vunpack.c.l.b16 %v756
    %v777 = vunpack.c.l.b16 %v757
    %v778 = vunpack.c.l.b16 %v758
    %v779 = vunpack.c.l.b16 %v759
    %v780 = vunpack.c.l.b16 %v760
    %v781 = vunpack.c.l.b16 %v761
    %v782 = vunpack.c.l.b16 %v762
    %v783 = vpack.c.b16 %v777, %v776
    %v784 = vpack.c.b16 %v779, %v778
    %v785 = vpack.c.b16 %v781, %v780
    %v786 = vpack.c.b16 %v782, %v782
    %v791 = vunpack.c.l.b16 %v747
    %v792 = vunpack.c.l.b16 %v748
    %v793 = vunpack.c.l.b16 %v749
    %v794 = vunpack.c.l.b16 %v750
    %v795 = vpack.c.b16 %v792, %v791
    %v796 = vpack.c.b16 %v794, %v793
    %v800 = vsel %vm278, %v783, 0
    %v803 = vsel %vm278, %v784, 0
    %v806 = vsel %vm278, %v785, 0
    %v809 = vsel %vm278, %v786, 0
    %811 = vmatprep.subr.bf16.mxu0 0
    %812 = vmatpush1.bf16.msra.mxu0 0
    %813 = vmatprep.subr.bf16.mxu0 0
    %814 = vmatpush1.bf16.msra.mxu0 0
    %815 = vmatprep.subr.bf16.mxu0 0
    %816 = vmatpush1.bf16.msra.mxu0 0
    %817 = vmatprep.subr.bf16.mxu0 0
    %818 = vmatpush1.bf16.msra.mxu0 0
    %819 = vmatprep.subr.bf16.mxu0 0
    %820 = vmatpush1.bf16.msra.mxu0 0
    %821 = vmatprep.subr.bf16.mxu0 0
    %822 = vmatpush1.bf16.msra.mxu0 0
    %823 = vmatprep.subr.bf16.mxu0 0
    %824 = vmatpush1.bf16.msra.mxu0 %v796
    %825 = vmatprep.subr.bf16.mxu0 0
    %826 = vmatpush1.bf16.msra.mxu0 %v795
    %827 = vmatprep.subr.bf16.mxu0 0
    %828 = vmatpush2.bf16.msra.mxu0 0
    %829 = vmatprep.subr.bf16.mxu0 0
    %830 = vmatpush2.bf16.msra.mxu0 0
    %831 = vmatprep.subr.bf16.mxu0 0
    %832 = vmatpush2.bf16.msra.mxu0 0
    %833 = vmatprep.subr.bf16.mxu0 0
    %834 = vmatpush2.bf16.msra.mxu0 0
    %835 = vmatprep.subr.bf16.mxu0 0
    %836 = vmatpush2.bf16.msra.mxu0 0
    %837 = vmatprep.subr.bf16.mxu0 0
    %838 = vmatpush2.bf16.msra.mxu0 0
    %839 = vmatprep.subr.bf16.mxu0 0
    %840 = vmatpush2.bf16.msra.mxu0 0
    %841 = vmatprep.subr.bf16.mxu0 0
    %842 = vmatpush2.bf16.msra.mxu0 0
    %843 = vmatprep.mubr.bf16.mxu0 0
    %844 = vmatmul.mubr.bf16.gmra.mxu0 %v800
    %v845 = vpop.f32.mrf.mxu0
    %v846 = vadd.f32 %v767, %v845
    %v847 = vpop.f32.mrf.mxu0
    %v848 = vpop.f32.mrf.mxu0
    %v849 = vadd.f32 %v767, %v848
    %v850 = vpop.f32.mrf.mxu0
    %851 = vmatprep.mubr.bf16.mxu0 0
    %852 = vmatmul.mubr.bf16.gmra.mxu0 %v803
    %v853 = vpop.f32.mrf.mxu0
    %v854 = vadd.f32 %v767, %v853
    %v855 = vpop.f32.mrf.mxu0
    %v856 = vpop.f32.mrf.mxu0
    %v857 = vadd.f32 %v767, %v856
    %v858 = vpop.f32.mrf.mxu0
    %859 = vmatprep.mubr.bf16.mxu0 0
    %860 = vmatmul.mubr.bf16.gmra.mxu0 %v806
    %v861 = vpop.f32.mrf.mxu0
    %v862 = vadd.f32 %v767, %v861
    %v863 = vpop.f32.mrf.mxu0
    %v864 = vpop.f32.mrf.mxu0
    %v865 = vadd.f32 %v767, %v864
    %v866 = vpop.f32.mrf.mxu0
    %867 = vmatprep.mubr.bf16.mxu0 0
    %868 = vmatmul.mubr.bf16.gmra.mxu0 %v809
    %v869 = vpop.f32.mrf.mxu0
    %v870 = vadd.f32 %v767, %v869
    %v871 = vpop.f32.mrf.mxu0
    %v872 = vpop.f32.mrf.mxu0
    %v873 = vpop.f32.mrf.mxu0
    %874 = vdwg.mxu0
    %875 = vst [vmem:[#allocation3] sm:$0xff] %v846
    %876 = vst [vmem:[#allocation3 + $0x8] sm:$0xff] %v849
    %877 = vst [vmem:[#allocation3 + $0x10] sm:$0xff] %v854
    %878 = vst [vmem:[#allocation3 + $0x18] sm:$0xff] %v857
    %879 = vst [vmem:[#allocation3 + $0x20] sm:$0xff] %v862
    %880 = vst [vmem:[#allocation3 + $0x28] sm:$0xff] %v865
    %881 = vst [vmem:[#allocation3 + $0x30] sm:$0xff] %v870
    %v882 = vld [vmem:[#allocation3] sm:$0xff]
    %v883 = vmul.f32 %v882, %v121
    %v884 = vtanh.pop %v883
    %v885 = vmul.f32 %v884, %v121
    %v886 = vadd.f32 %v885, %v122
    %888 = vrot.lane.b32.xlu0 %v886, 64
    %v889 = vpop.permute.xlu0 %888
    %v891 = vmul.f32 %v886, %v889
    %v892 = vtanh.pop %v891
    %894 = vrot.lane.b32.xlu0 %v892, 96
    %v895 = vpop.permute.xlu0 %894
    %v897 = vmul.f32 %v886, %v895
    %v898 = vld [vmem:[%s262] sm:$0xff]
    %v899 = vpack.c.bf16 %v897, %v897
    %901 = vrot.lane.b32.xlu0 %v899, 32
    %v902 = vpop.permute.xlu0 %901
    %v907 = vunpack.c.l.b16 %v751
    %v908 = vunpack.c.l.b16 %v752
    %v909 = vunpack.c.l.b16 %v753
    %v910 = vunpack.c.l.b16 %v754
    %v911 = vpack.c.b16 %v908, %v907
    %v912 = vpack.c.b16 %v910, %v909
    %v916 = vsel %vm278, %v902, 0
    %918 = vmatprep.subr.bf16.mxu0 0
    %919 = vmatpush1.bf16.msra.mxu0 0
    %920 = vmatprep.subr.bf16.mxu0 0
    %921 = vmatpush1.bf16.msra.mxu0 0
    %922 = vmatprep.subr.bf16.mxu0 0
    %923 = vmatpush1.bf16.msra.mxu0 0
    %924 = vmatprep.subr.bf16.mxu0 0
    %925 = vmatpush1.bf16.msra.mxu0 0
    %926 = vmatprep.subr.bf16.mxu0 0
    %927 = vmatpush1.bf16.msra.mxu0 0
    %928 = vmatprep.subr.bf16.mxu0 0
    %929 = vmatpush1.bf16.msra.mxu0 0
    %930 = vmatprep.subr.bf16.mxu0 0
    %931 = vmatpush1.bf16.msra.mxu0 %v912
    %932 = vmatprep.subr.bf16.mxu0 0
    %933 = vmatpush1.bf16.msra.mxu0 %v911
    %934 = vmatprep.subr.bf16.mxu0 0
    %935 = vmatpush2.bf16.msra.mxu0 0
    %936 = vmatprep.subr.bf16.mxu0 0
    %937 = vmatpush2.bf16.msra.mxu0 0
    %938 = vmatprep.subr.bf16.mxu0 0
    %939 = vmatpush2.bf16.msra.mxu0 0
    %940 = vmatprep.subr.bf16.mxu0 0
    %941 = vmatpush2.bf16.msra.mxu0 0
    %942 = vmatprep.subr.bf16.mxu0 0
    %943 = vmatpush2.bf16.msra.mxu0 0
    %944 = vmatprep.subr.bf16.mxu0 0
    %945 = vmatpush2.bf16.msra.mxu0 0
    %946 = vmatprep.subr.bf16.mxu0 0
    %947 = vmatpush2.bf16.msra.mxu0 0
    %948 = vmatprep.subr.bf16.mxu0 0
    %949 = vmatpush2.bf16.msra.mxu0 0
    %950 = vmatprep.mubr.bf16.mxu0 0
    %951 = vmatmul.mubr.bf16.gmra.mxu0 %v916
    %v952 = vpop.f32.mrf.mxu0
    %v953 = vadd.f32 0.0, %v952
    %v954 = vpop.f32.mrf.mxu0
    %v955 = vpop.f32.mrf.mxu0
    %v956 = vpop.f32.mrf.mxu0
    %957 = vdwg.mxu0
    %v958 = vadd.f32 %v898, %v953
    %v959 = vmul.f32 %v958, %v121
    %v960 = vtanh.pop %v959
    %v961 = vmul.f32 %v960, %v121
    %v962 = vadd.f32 %v961, %v122
    %964 = vrot.lane.b32.xlu0 %v891, 32
    %v965 = vpop.permute.xlu0 %964
    %v967 = vmul.f32 %v962, %v965
    %969 = vrot.lane.b32.xlu0 %v962, 64
    %v970 = vpop.permute.xlu0 %969
    %v972 = vmul.f32 %v962, %v970
    %974 = vrot.lane.b32.xlu0 %v972, 32
    %v975 = vpop.permute.xlu0 %974
    %v977 = vadd.f32 %v967, %v975
    %v978 = vtanh.pop %v977
    %980 = vrot.lane.b32.xlu0 %v978, 64
    %v981 = vpop.permute.xlu0 %980
    %v983 = vmul.f32 %v962, %v981
    %v984 = vld [vmem:[%s357] sm:$0xff]
    %v985 = vpack.c.bf16 %v983, %v983
    %987 = vrot.lane.b32.xlu0 %v985, 32
    %v988 = vpop.permute.xlu0 %987
    %v990 = vsel %vm278, %v988, 0
    %992 = vmatprep.subr.bf16.mxu0 0
    %993 = vmatpush1.bf16.msra.mxu0 0
    %994 = vmatprep.subr.bf16.mxu0 0
    %995 = vmatpush1.bf16.msra.mxu0 0
    %996 = vmatprep.subr.bf16.mxu0 0
    %997 = vmatpush1.bf16.msra.mxu0 0
    %998 = vmatprep.subr.bf16.mxu0 0
    %999 = vmatpush1.bf16.msra.mxu0 0
    %1000 = vmatprep.subr.bf16.mxu0 0
    %1001 = vmatpush1.bf16.msra.mxu0 0
    %1002 = vmatprep.subr.bf16.mxu0 0
    %1003 = vmatpush1.bf16.msra.mxu0 0
    %1004 = vmatprep.subr.bf16.mxu0 0
    %1005 = vmatpush1.bf16.msra.mxu0 %v912
    %1006 = vmatprep.subr.bf16.mxu0 0
    %1007 = vmatpush1.bf16.msra.mxu0 %v911
    %1008 = vmatprep.subr.bf16.mxu0 0
    %1009 = vmatpush2.bf16.msra.mxu0 0
    %1010 = vmatprep.subr.bf16.mxu0 0
    %1011 = vmatpush2.bf16.msra.mxu0 0
    %1012 = vmatprep.subr.bf16.mxu0 0
    %1013 = vmatpush2.bf16.msra.mxu0 0
    %1014 = vmatprep.subr.bf16.mxu0 0
    %1015 = vmatpush2.bf16.msra.mxu0 0
    %1016 = vmatprep.subr.bf16.mxu0 0
    %1017 = vmatpush2.bf16.msra.mxu0 0
    %1018 = vmatprep.subr.bf16.mxu0 0
    %1019 = vmatpush2.bf16.msra.mxu0 0
    %1020 = vmatprep.subr.bf16.mxu0 0
    %1021 = vmatpush2.bf16.msra.mxu0 0
    %1022 = vmatprep.subr.bf16.mxu0 0
    %1023 = vmatpush2.bf16.msra.mxu0 0
    %1024 = vmatprep.mubr.bf16.mxu0 0
    %1025 = vmatmul.mubr.bf16.gmra.mxu0 %v990
    %v1026 = vpop.f32.mrf.mxu0
    %v1027 = vadd.f32 0.0, %v1026
    %v1028 = vpop.f32.mrf.mxu0
    %v1029 = vpop.f32.mrf.mxu0
    %v1030 = vpop.f32.mrf.mxu0
    %1031 = vdwg.mxu0
    %v1032 = vadd.f32 %v984, %v1027
    %v1033 = vmul.f32 %v1032, %v121
    %v1034 = vtanh.pop %v1033
    %v1035 = vmul.f32 %v1034, %v121
    %v1036 = vadd.f32 %v1035, %v122
    %v1037 = vmul.f32 %v1036, %v977
    %1039 = vrot.lane.b32.xlu0 %v1036, 64
    %v1040 = vpop.permute.xlu0 %1039
    %v1042 = vmul.f32 %v1036, %v1040
    %1044 = vrot.lane.b32.xlu0 %v1042, 32
    %v1045 = vpop.permute.xlu0 %1044
    %v1047 = vadd.f32 %v1037, %v1045
    %v1048 = vtanh.pop %v1047
    %1050 = vrot.lane.b32.xlu0 %v1048, 64
    %v1051 = vpop.permute.xlu0 %1050
    %v1053 = vmul.f32 %v1036, %v1051
    %v1054 = vld [vmem:[%s435] sm:$0xff]
    %v1055 = vpack.c.bf16 %v1053, %v1053
    %1057 = vrot.lane.b32.xlu0 %v1055, 32
    %v1058 = vpop.permute.xlu0 %1057
    %v1060 = vsel %vm278, %v1058, 0
    %1062 = vmatprep.subr.bf16.mxu0 0
    %1063 = vmatpush1.bf16.msra.mxu0 0
    %1064 = vmatprep.subr.bf16.mxu0 0
    %1065 = vmatpush1.bf16.msra.mxu0 0
    %1066 = vmatprep.subr.bf16.mxu0 0
    %1067 = vmatpush1.bf16.msra.mxu0 0
    %1068 = vmatprep.subr.bf16.mxu0 0
    %1069 = vmatpush1.bf16.msra.mxu0 0
    %1070 = vmatprep.subr.bf16.mxu0 0
    %1071 = vmatpush1.bf16.msra.mxu0 0
    %1072 = vmatprep.subr.bf16.mxu0 0
    %1073 = vmatpush1.bf16.msra.mxu0 0
    %1074 = vmatprep.subr.bf16.mxu0 0
    %1075 = vmatpush1.bf16.msra.mxu0 %v912
    %1076 = vmatprep.subr.bf16.mxu0 0
    %1077 = vmatpush1.bf16.msra.mxu0 %v911
    %1078 = vmatprep.subr.bf16.mxu0 0
    %1079 = vmatpush2.bf16.msra.mxu0 0
    %1080 = vmatprep.subr.bf16.mxu0 0
    %1081 = vmatpush2.bf16.msra.mxu0 0
    %1082 = vmatprep.subr.bf16.mxu0 0
    %1083 = vmatpush2.bf16.msra.mxu0 0
    %1084 = vmatprep.subr.bf16.mxu0 0
    %1085 = vmatpush2.bf16.msra.mxu0 0
    %1086 = vmatprep.subr.bf16.mxu0 0
    %1087 = vmatpush2.bf16.msra.mxu0 0
    %1088 = vmatprep.subr.bf16.mxu0 0
    %1089 = vmatpush2.bf16.msra.mxu0 0
    %1090 = vmatprep.subr.bf16.mxu0 0
    %1091 = vmatpush2.bf16.msra.mxu0 0
    %1092 = vmatprep.subr.bf16.mxu0 0
    %1093 = vmatpush2.bf16.msra.mxu0 0
    %1094 = vmatprep.mubr.bf16.mxu0 0
    %1095 = vmatmul.mubr.bf16.gmra.mxu0 %v1060
    %v1096 = vpop.f32.mrf.mxu0
    %v1097 = vadd.f32 0.0, %v1096
    %v1098 = vpop.f32.mrf.mxu0
    %v1099 = vpop.f32.mrf.mxu0
    %v1100 = vpop.f32.mrf.mxu0
    %1101 = vdwg.mxu0
    %v1102 = vadd.f32 %v1054, %v1097
    %v1103 = vmul.f32 %v1102, %v121
    %v1104 = vtanh.pop %v1103
    %v1105 = vmul.f32 %v1104, %v121
    %v1106 = vadd.f32 %v1105, %v122
    %v1107 = vmul.f32 %v1106, %v1047
    %1109 = vrot.lane.b32.xlu0 %v1106, 64
    %v1110 = vpop.permute.xlu0 %1109
    %v1112 = vmul.f32 %v1106, %v1110
    %1114 = vrot.lane.b32.xlu0 %v1112, 32
    %v1115 = vpop.permute.xlu0 %1114
    %v1117 = vadd.f32 %v1107, %v1115
    %v1118 = vtanh.pop %v1117
    %1120 = vrot.lane.b32.xlu0 %v1118, 64
    %v1121 = vpop.permute.xlu0 %1120
    %v1123 = vmul.f32 %v1106, %v1121
    %v1124 = vld [vmem:[%s513] sm:$0xff]
    %v1125 = vpack.c.bf16 %v1123, %v1123
    %1127 = vrot.lane.b32.xlu0 %v1125, 32
    %v1128 = vpop.permute.xlu0 %1127
    %v1130 = vsel %vm278, %v1128, 0
    %1132 = vmatprep.subr.bf16.mxu0 0
    %1133 = vmatpush1.bf16.msra.mxu0 0
    %1134 = vmatprep.subr.bf16.mxu0 0
    %1135 = vmatpush1.bf16.msra.mxu0 0
    %1136 = vmatprep.subr.bf16.mxu0 0
    %1137 = vmatpush1.bf16.msra.mxu0 0
    %1138 = vmatprep.subr.bf16.mxu0 0
    %1139 = vmatpush1.bf16.msra.mxu0 0
    %1140 = vmatprep.subr.bf16.mxu0 0
    %1141 = vmatpush1.bf16.msra.mxu0 0
    %1142 = vmatprep.subr.bf16.mxu0 0
    %1143 = vmatpush1.bf16.msra.mxu0 0
    %1144 = vmatprep.subr.bf16.mxu0 0
    %1145 = vmatpush1.bf16.msra.mxu0 %v912
    %1146 = vmatprep.subr.bf16.mxu0 0
    %1147 = vmatpush1.bf16.msra.mxu0 %v911
    %1148 = vmatprep.subr.bf16.mxu0 0
    %1149 = vmatpush2.bf16.msra.mxu0 0
    %1150 = vmatprep.subr.bf16.mxu0 0
    %1151 = vmatpush2.bf16.msra.mxu0 0
    %1152 = vmatprep.subr.bf16.mxu0 0
    %1153 = vmatpush2.bf16.msra.mxu0 0
    %1154 = vmatprep.subr.bf16.mxu0 0
    %1155 = vmatpush2.bf16.msra.mxu0 0
    %1156 = vmatprep.subr.bf16.mxu0 0
    %1157 = vmatpush2.bf16.msra.mxu0 0
    %1158 = vmatprep.subr.bf16.mxu0 0
    %1159 = vmatpush2.bf16.msra.mxu0 0
    %1160 = vmatprep.subr.bf16.mxu0 0
    %1161 = vmatpush2.bf16.msra.mxu0 0
    %1162 = vmatprep.subr.bf16.mxu0 0
    %1163 = vmatpush2.bf16.msra.mxu0 0
    %1164 = vmatprep.mubr.bf16.mxu0 0
    %1165 = vmatmul.mubr.bf16.gmra.mxu0 %v1130
    %v1166 = vpop.f32.mrf.mxu0
    %v1167 = vadd.f32 0.0, %v1166
    %v1168 = vpop.f32.mrf.mxu0
    %v1169 = vpop.f32.mrf.mxu0
    %v1170 = vpop.f32.mrf.mxu0
    %1171 = vdwg.mxu0
    %v1172 = vadd.f32 %v1124, %v1167
    %v1173 = vmul.f32 %v1172, %v121
    %v1174 = vtanh.pop %v1173
    %v1175 = vmul.f32 %v1174, %v121
    %v1176 = vadd.f32 %v1175, %v122
    %v1177 = vmul.f32 %v1176, %v1117
    %1179 = vrot.lane.b32.xlu0 %v1176, 64
    %v1180 = vpop.permute.xlu0 %1179
    %v1182 = vmul.f32 %v1176, %v1180
    %1184 = vrot.lane.b32.xlu0 %v1182, 32
    %v1185 = vpop.permute.xlu0 %1184
    %v1187 = vadd.f32 %v1177, %v1185
    %v1188 = vtanh.pop %v1187
    %1190 = vrot.lane.b32.xlu0 %v1188, 64
    %v1191 = vpop.permute.xlu0 %1190
    %v1193 = vmul.f32 %v1176, %v1191
    %v1194 = vld [vmem:[%s591] sm:$0xff]
    %v1195 = vpack.c.bf16 %v1193, %v1193
    %1197 = vrot.lane.b32.xlu0 %v1195, 32
    %v1198 = vpop.permute.xlu0 %1197
    %v1200 = vsel %vm278, %v1198, 0
    %1202 = vmatprep.subr.bf16.mxu0 0
    %1203 = vmatpush1.bf16.msra.mxu0 0
    %1204 = vmatprep.subr.bf16.mxu0 0
    %1205 = vmatpush1.bf16.msra.mxu0 0
    %1206 = vmatprep.subr.bf16.mxu0 0
    %1207 = vmatpush1.bf16.msra.mxu0 0
    %1208 = vmatprep.subr.bf16.mxu0 0
    %1209 = vmatpush1.bf16.msra.mxu0 0
    %1210 = vmatprep.subr.bf16.mxu0 0
    %1211 = vmatpush1.bf16.msra.mxu0 0
    %1212 = vmatprep.subr.bf16.mxu0 0
    %1213 = vmatpush1.bf16.msra.mxu0 0
    %1214 = vmatprep.subr.bf16.mxu0 0
    %1215 = vmatpush1.bf16.msra.mxu0 %v912
    %1216 = vmatprep.subr.bf16.mxu0 0
    %1217 = vmatpush1.bf16.msra.mxu0 %v911
    %1218 = vmatprep.subr.bf16.mxu0 0
    %1219 = vmatpush2.bf16.msra.mxu0 0
    %1220 = vmatprep.subr.bf16.mxu0 0
    %1221 = vmatpush2.bf16.msra.mxu0 0
    %1222 = vmatprep.subr.bf16.mxu0 0
    %1223 = vmatpush2.bf16.msra.mxu0 0
    %1224 = vmatprep.subr.bf16.mxu0 0
    %1225 = vmatpush2.bf16.msra.mxu0 0
    %1226 = vmatprep.subr.bf16.mxu0 0
    %1227 = vmatpush2.bf16.msra.mxu0 0
    %1228 = vmatprep.subr.bf16.mxu0 0
    %1229 = vmatpush2.bf16.msra.mxu0 0
    %1230 = vmatprep.subr.bf16.mxu0 0
    %1231 = vmatpush2.bf16.msra.mxu0 0
    %1232 = vmatprep.subr.bf16.mxu0 0
    %1233 = vmatpush2.bf16.msra.mxu0 0
    %1234 = vmatprep.mubr.bf16.mxu0 0
    %1235 = vmatmul.mubr.bf16.gmra.mxu0 %v1200
    %v1236 = vpop.f32.mrf.mxu0
    %v1237 = vadd.f32 0.0, %v1236
    %v1238 = vpop.f32.mrf.mxu0
    %v1239 = vpop.f32.mrf.mxu0
    %v1240 = vpop.f32.mrf.mxu0
    %1241 = vdwg.mxu0
    %v1242 = vadd.f32 %v1194, %v1237
    %v1243 = vmul.f32 %v1242, %v121
    %v1244 = vtanh.pop %v1243
    %v1245 = vmul.f32 %v1244, %v121
    %v1246 = vadd.f32 %v1245, %v122
    %v1247 = vmul.f32 %v1246, %v1187
    %1249 = vrot.lane.b32.xlu0 %v1246, 64
    %v1250 = vpop.permute.xlu0 %1249
    %v1252 = vmul.f32 %v1246, %v1250
    %1254 = vrot.lane.b32.xlu0 %v1252, 32
    %v1255 = vpop.permute.xlu0 %1254
    %v1257 = vadd.f32 %v1247, %v1255
    %v1258 = vtanh.pop %v1257
    %1260 = vrot.lane.b32.xlu0 %v1258, 64
    %v1261 = vpop.permute.xlu0 %1260
    %v1263 = vmul.f32 %v1246, %v1261
    %v1264 = vld [vmem:[%s669] sm:$0xff]
    %v1265 = vpack.c.bf16 %v1263, %v1263
    %1267 = vrot.lane.b32.xlu0 %v1265, 32
    %v1268 = vpop.permute.xlu0 %1267
    %v1270 = vsel %vm278, %v1268, 0
    %1272 = vmatprep.subr.bf16.mxu0 0
    %1273 = vmatpush1.bf16.msra.mxu0 0
    %1274 = vmatprep.subr.bf16.mxu0 0
    %1275 = vmatpush1.bf16.msra.mxu0 0
    %1276 = vmatprep.subr.bf16.mxu0 0
    %1277 = vmatpush1.bf16.msra.mxu0 0
    %1278 = vmatprep.subr.bf16.mxu0 0
    %1279 = vmatpush1.bf16.msra.mxu0 0
    %1280 = vmatprep.subr.bf16.mxu0 0
    %1281 = vmatpush1.bf16.msra.mxu0 0
    %1282 = vmatprep.subr.bf16.mxu0 0
    %1283 = vmatpush1.bf16.msra.mxu0 0
    %1284 = vmatprep.subr.bf16.mxu0 0
    %1285 = vmatpush1.bf16.msra.mxu0 %v912
    %1286 = vmatprep.subr.bf16.mxu0 0
    %1287 = vmatpush1.bf16.msra.mxu0 %v911
    %1288 = vmatprep.subr.bf16.mxu0 0
    %1289 = vmatpush2.bf16.msra.mxu0 0
    %1290 = vmatprep.subr.bf16.mxu0 0
    %1291 = vmatpush2.bf16.msra.mxu0 0
    %1292 = vmatprep.subr.bf16.mxu0 0
    %1293 = vmatpush2.bf16.msra.mxu0 0
    %1294 = vmatprep.subr.bf16.mxu0 0
    %1295 = vmatpush2.bf16.msra.mxu0 0
    %1296 = vmatprep.subr.bf16.mxu0 0
    %1297 = vmatpush2.bf16.msra.mxu0 0
    %1298 = vmatprep.subr.bf16.mxu0 0
    %1299 = vmatpush2.bf16.msra.mxu0 0
    %1300 = vmatprep.subr.bf16.mxu0 0
    %1301 = vmatpush2.bf16.msra.mxu0 0
    %1302 = vmatprep.subr.bf16.mxu0 0
    %1303 = vmatpush2.bf16.msra.mxu0 0
    %1304 = vmatprep.mubr.bf16.mxu0 0
    %1305 = vmatmul.mubr.bf16.gmra.mxu0 %v1270
    %v1306 = vpop.f32.mrf.mxu0
    %v1307 = vadd.f32 0.0, %v1306
    %v1308 = vpop.f32.mrf.mxu0
    %v1309 = vpop.f32.mrf.mxu0
    %v1310 = vpop.f32.mrf.mxu0
    %1311 = vdwg.mxu0
    %v1312 = vadd.f32 %v1264, %v1307
    %v1313 = vmul.f32 %v1312, %v121
    %v1314 = vtanh.pop %v1313
    %v1315 = vmul.f32 %v1314, %v121
    %v1316 = vadd.f32 %v1315, %v122
    %v1317 = vmul.f32 %v1316, %v1257
    %1319 = vrot.lane.b32.xlu0 %v1316, 64
    %v1320 = vpop.permute.xlu0 %1319
    %v1322 = vmul.f32 %v1316, %v1320
    %1324 = vrot.lane.b32.xlu0 %v1322, 32
    %v1325 = vpop.permute.xlu0 %1324
    %v1327 = vadd.f32 %v1317, %v1325
    %v1328 = vtanh.pop %v1327
    %1330 = vrot.lane.b32.xlu0 %v1328, 64
    %v1331 = vpop.permute.xlu0 %1330
    %v1333 = vmul.f32 %v1316, %v1331
    %v1334 = vpack.c.bf16 %v1333, %v1333
    %v1335 = vld [vmem:[#allocation13] sm:$0xf]
    %v1336 = vld [vmem:[#allocation13 + $0x4] sm:$0xf]
    %v1337 = vld [vmem:[#allocation13 + $0x8] sm:$0xf]
    %v1338 = vld [vmem:[#allocation13 + $0xc] sm:$0xf]
    %v1339 = vld [vmem:[%s8] sm:$0x1]
    %v1341 = vlaneseq
    %v1342 = vshrl.u32 %v1341, 7
    %v1343 = vsub.s32 0, %v1342
    %v1344 = vrot.slane %v1339, %v1343
    %1347 = vrot.lane.b32.xlu0 %v1334, 32
    %v1348 = vpop.permute.xlu0 %1347
    %v1353 = vunpack.c.l.b16 %v1335
    %v1354 = vunpack.c.l.b16 %v1336
    %v1355 = vunpack.c.l.b16 %v1337
    %v1356 = vunpack.c.l.b16 %v1338
    %v1357 = vpack.c.b16 %v1354, %v1353
    %v1358 = vpack.c.b16 %v1356, %v1355
    %v1362 = vsel %vm278, %v1348, 0
    %1364 = vmatprep.subr.bf16.mxu0 0
    %1365 = vmatpush1.bf16.msra.mxu0 0
    %1366 = vmatprep.subr.bf16.mxu0 0
    %1367 = vmatpush1.bf16.msra.mxu0 0
    %1368 = vmatprep.subr.bf16.mxu0 0
    %1369 = vmatpush1.bf16.msra.mxu0 0
    %1370 = vmatprep.subr.bf16.mxu0 0
    %1371 = vmatpush1.bf16.msra.mxu0 0
    %1372 = vmatprep.subr.bf16.mxu0 0
    %1373 = vmatpush1.bf16.msra.mxu0 0
    %1374 = vmatprep.subr.bf16.mxu0 0
    %1375 = vmatpush1.bf16.msra.mxu0 0
    %1376 = vmatprep.subr.bf16.mxu0 0
    %1377 = vmatpush1.bf16.msra.mxu0 %v1358
    %1378 = vmatprep.subr.bf16.mxu0 0
    %1379 = vmatpush1.bf16.msra.mxu0 %v1357
    %1380 = vmatprep.subr.bf16.mxu0 0
    %1381 = vmatpush2.bf16.msra.mxu0 0
    %1382 = vmatprep.subr.bf16.mxu0 0
    %1383 = vmatpush2.bf16.msra.mxu0 0
    %1384 = vmatprep.subr.bf16.mxu0 0
    %1385 = vmatpush2.bf16.msra.mxu0 0
    %1386 = vmatprep.subr.bf16.mxu0 0
    %1387 = vmatpush2.bf16.msra.mxu0 0
    %1388 = vmatprep.subr.bf16.mxu0 0
    %1389 = vmatpush2.bf16.msra.mxu0 0
    %1390 = vmatprep.subr.bf16.mxu0 0
    %1391 = vmatpush2.bf16.msra.mxu0 0
    %1392 = vmatprep.subr.bf16.mxu0 0
    %1393 = vmatpush2.bf16.msra.mxu0 0
    %1394 = vmatprep.subr.bf16.mxu0 0
    %1395 = vmatpush2.bf16.msra.mxu0 0
    %1396 = vmatprep.mubr.bf16.mxu0 0
    %1397 = vmatmul.mubr.bf16.gmra.mxu0 %v1362
    %v1398 = vpop.f32.mrf.mxu0
    %v1399 = vadd.f32 %v1344, %v1398
    %v1400 = vpop.f32.mrf.mxu0
    %v1401 = vpop.f32.mrf.mxu0
    %v1402 = vpop.f32.mrf.mxu0
    %1403 = vdwg.mxu0
    %1404 = vst [vmem:[#allocation15] sm:$0xff] %v1399
    // Predicated region
    $region62: #{tpu_custom_call.1} parent=1 // pred_check
      _
    $region63: #{tpu_custom_call.1} parent=1 // pred_check_branch
      %1406 = sbr.rel (0) target = $region65
    $region64: #{tpu_custom_call.1} parent=1 // pred_region
      %s1408 = ssub.s32 128, 128
      %1409 = vsyncadd [#allocation6], %s1408
      %s1411 = sshll.u32 [#allocation15], 4
      %s1412 = int_to_ptr.vmem [resolvable:$true] %s1411
      %1414 = dma.vmem_to_hbm [thread:$0]  %s1412, 128, %s9, [#allocation6]
    $region65: #{tpu_custom_call.1} parent=1 // pred_fallthru
      _
    // Predicated region
    $region66: #{tpu_custom_call.1} parent=1 // pred_check
      _
    $region67: #{tpu_custom_call.1} parent=1 // pred_check_branch
      %1416 = sbr.rel (0) target = $region69
    $region68: #{tpu_custom_call.1} parent=1 // pred_region
      %1417 = dma.done [#allocation6], 128
    $region69: #{tpu_custom_call.1} parent=1 // pred_fallthru
      _
    %1418 = vsyncpa [#allocation5], 1
    %1419 = vsyncpa [#allocation8], 1
    %1420 = vsyncpa [#allocation11], 1
    %1421 = vsyncpa [#allocation14], 1
    %1422 = vsyncpa [#allocation6], 1

</llo_original>
